<compile_context>
chip_gen: v5e
topology: v5e:2x2
jax: 0.10.0
libtpu: 0.0.40
codegen_flags: <defaults>
</compile_context>

<pallas_src>
from functools import partial

import jax
import jax.numpy as jnp
from jax.experimental import pallas as pl
from jax.experimental.pallas import tpu as pltpu


def _attn_kernel(x_ref, wq_ref, wkv_ref, bq_ref, wp_ref, bp_ref,
                 tapm_ref, headm_ref, o_ref, *, num_heads, scale, bb, seq_len):
    f32, bf16 = jnp.float32, jnp.bfloat16
    N = seq_len
    H = num_heads
    C = x_ref.shape[-1]
    M = bb * N

    x = x_ref[...].astype(f32).reshape(M, C)          # (BB*N, C) stacked slab

    # ---- conv taps (kernel=3, padding=1) via roll + precomputed edge masks.
    # roll wraps rows across sequence boundaries inside the slab; tap masks
    # zero exactly those wrapped rows (row % N == 0 for x[n-1], == N-1 for
    # x[n+1]).
    xm1 = pltpu.roll(x, 1, axis=0) * tapm_ref[0]       # x[n-1]
    xp1 = pltpu.roll(x, M - 1, axis=0) * tapm_ref[1]   # x[n+1]
    xcat = jnp.concatenate([xm1, x, xp1], axis=-1).astype(bf16)   # (M, 3C)

    # ---- q from conv taps, [k|v] from x: two MXU pushes, bf16 in / f32 acc.
    q = jnp.dot(xcat, wq_ref[...], preferred_element_type=f32) + bq_ref[...]
    kv = jnp.dot(x.astype(bf16), wkv_ref[...], preferred_element_type=f32)
    k = kv[:, :C].astype(bf16).reshape(bb, N, C)
    v = kv[:, C:].astype(bf16).reshape(bb, N, C)

    # ---- head-packed attention: heads stacked along sublanes, block-diagonal
    # lane mask (precomputed) so scores for head h contract only its hd lanes.
    hm = headm_ref[...]                                            # (H*N, C) 0/1
    q_blk = (jnp.broadcast_to(q.reshape(bb, 1, N, C), (bb, H, N, C))
             .reshape(bb, H * N, C) * hm[None]).astype(bf16)       # (BB, H*N, C)

    s = jax.lax.dot_general(q_blk, k, (((2,), (2,)), ((0,), (0,))),
                            preferred_element_type=f32) * scale    # (BB, H*N, N)
    s = s - jnp.max(s, axis=-1, keepdims=True)
    p = jnp.exp(s)
    p = p * pl.reciprocal(jnp.sum(p, axis=-1, keepdims=True), approx=True)

    pv = jax.lax.dot_general(p.astype(bf16), v, (((2,), (1,)), ((0,), (0,))),
                             preferred_element_type=f32)            # (BB, H*N, C)
    pv = pv * hm[None]
    attn_out = jnp.sum(pv.reshape(bb, H, N, C), axis=1).reshape(M, C)

    # ---- proj(q - attn_out); dropouts are p=0.0 -> identity.
    y = jnp.dot((q - attn_out).astype(bf16), wp_ref[...],
                preferred_element_type=f32) + bp_ref[...]
    o_ref[...] = y.reshape(bb, N, C).astype(o_ref.dtype)


def _pick_block_batch(B, N):
    """Batches per grid step: fill MXU sublanes (BB*N ~ 128) while keeping at
    least 2 grid steps when B >= 2 (both v7x TensorCores busy)."""
    if B < 2:
        return 1
    target = max(1, 128 // max(N, 1))
    limit = max(1, min(target, B // 2))
    bb = 1
    for c in range(1, limit + 1):
        if B % c == 0:
            bb = c
    return bb


def attention_pallas(x, params, num_heads):
    B, N, C = x.shape
    hd = C // num_heads
    scale = hd ** (-0.5)
    f32, bf16 = jnp.float32, jnp.bfloat16
    BB = _pick_block_batch(B, N)
    M = BB * N

    # ---- wrapper-side weight prep (bf16 for the MXU) ----
    wq = params["wq"]                                    # (C_out, C_in, 3) Conv1d
    w_qconv = jnp.concatenate(
        [wq[:, :, 0].T, wq[:, :, 1].T, wq[:, :, 2].T], axis=0).astype(bf16)  # (3C, C)
    w_kv = jnp.concatenate(
        [params["wk"].T, params["wv"].T], axis=1).astype(bf16)               # (C, 2C)
    wpT = params["wp"].T.astype(bf16)                                        # (C, C)
    bq = params["bq"].reshape(1, C).astype(f32)
    bp = params["bp"].reshape(1, C).astype(f32)

    # ---- precomputed loop-invariant masks (constant index_map inputs) ----
    rows = jnp.arange(M)
    keep_m1 = (rows % N != 0).astype(f32)[:, None] * jnp.ones((1, C), f32)
    keep_p1 = (rows % N != N - 1).astype(f32)[:, None] * jnp.ones((1, C), f32)
    tap_mask = jnp.stack([keep_m1, keep_p1], axis=0)                 # (2, M, C)
    r_head = jnp.arange(num_heads * N) // N
    c_head = jnp.arange(C) // hd
    head_mask = (r_head[:, None] == c_head[None, :]).astype(f32)     # (H*N, C)

    spec_x = pl.BlockSpec((BB, N, C), lambda i: (i, 0, 0))
    in_specs = [
        spec_x,
        pl.BlockSpec((3 * C, C), lambda i: (0, 0)),
        pl.BlockSpec((C, 2 * C), lambda i: (0, 0)),
        pl.BlockSpec((1, C), lambda i: (0, 0)),
        pl.BlockSpec((C, C), lambda i: (0, 0)),
        pl.BlockSpec((1, C), lambda i: (0, 0)),
        pl.BlockSpec((2, M, C), lambda i: (0, 0, 0)),
        pl.BlockSpec((num_heads * N, C), lambda i: (0, 0)),
    ]

    kernel = partial(_attn_kernel, num_heads=num_heads, scale=scale,
                     bb=BB, seq_len=N)
    out = pl.pallas_call(
        kernel,
        out_shape=jax.ShapeDtypeStruct((B, N, C), x.dtype),
        grid=(B // BB,),
        in_specs=in_specs,
        out_specs=spec_x,
        compiler_params=pltpu.CompilerParams(dimension_semantics=("parallel",)),
    )(x, w_qconv, w_kv, bq, wpT, bp, tap_mask, head_mask)
    return out


def attention_ref(x, params, num_heads):
    """Pure-JAX f32 reference mirroring the PyTorch forward exactly."""
    B, N, C = x.shape
    hd = C // num_heads
    scale = hd ** (-0.5)
    wq, bq = params["wq"], params["bq"]
    zeros = jnp.zeros((B, 1, C), x.dtype)
    xm1 = jnp.concatenate([zeros, x[:, :-1, :]], axis=1)
    xp1 = jnp.concatenate([x[:, 1:, :], zeros], axis=1)
    q = xm1 @ wq[:, :, 0].T + x @ wq[:, :, 1].T + xp1 @ wq[:, :, 2].T + bq
    k = x @ params["wk"].T
    v = x @ params["wv"].T

    def split(t):
        return t.reshape(B, N, num_heads, hd).transpose(0, 2, 1, 3)

    qh, kh, vh = split(q), split(k), split(v)
    attn = jnp.einsum("bhnd,bhmd->bhnm", qh, kh) * scale
    attn = jax.nn.softmax(attn, axis=-1)
    o = jnp.einsum("bhnm,bhmd->bhnd", attn, vh).transpose(0, 2, 1, 3).reshape(B, N, C)
    return (q - o) @ params["wp"].T + params["bp"]


if __name__ == "__main__":
    B, N, C = 8, 16, 32
    num_heads = 8

    key = jax.random.PRNGKey(0)
    keys = jax.random.split(key, 8)
    # Deterministic synthetic parameters (shapes follow nn.Module __init__):
    #  Conv1d(C, C, 3) weight (C, C, 3) + bias (C,); k/v Linear no bias;
    #  proj Linear (C, C) + bias (C,).
    params = {
        "wq": jax.random.normal(keys[0], (C, C, 3), jnp.float32) * 0.05,
        "bq": jax.random.normal(keys[1], (C,), jnp.float32) * 0.05,
        "wk": jax.random.normal(keys[2], (C, C), jnp.float32) * 0.05,
        "wv": jax.random.normal(keys[3], (C, C), jnp.float32) * 0.05,
        "wp": jax.random.normal(keys[4], (C, C), jnp.float32) * 0.05,
        "bp": jax.random.normal(keys[5], (C,), jnp.float32) * 0.05,
    }
    x = jax.random.normal(keys[6], (B, N, C), jnp.float32)

    out = attention_pallas(x, params, num_heads)
    out = jax.block_until_ready(out)

    ref = attention_ref(x, params, num_heads)
    assert out.shape == (B, N, C)
    # Tolerance accounts for bf16 MXU operands (f32 accumulation) and the
    # EUP approximate reciprocal in the softmax normalization.
    assert jnp.allclose(out, ref, atol=2e-2, rtol=2e-2), (
        f"max abs diff {jnp.max(jnp.abs(out - ref))}")

    print("KERNEL_OK")
</pallas_src>

<mosaic_0001>
module attributes {stable_mosaic.version = 11 : i64} {
  func.func @_attn_kernel(%arg0: i32, %arg1: memref<4x16x32xf32, #tpu.memory_space<vmem>>, %arg2: memref<96x32xbf16, #tpu.memory_space<vmem>>, %arg3: memref<32x64xbf16, #tpu.memory_space<vmem>>, %arg4: memref<1x32xf32, #tpu.memory_space<vmem>>, %arg5: memref<32x32xbf16, #tpu.memory_space<vmem>>, %arg6: memref<1x32xf32, #tpu.memory_space<vmem>>, %arg7: memref<2x64x32xf32, #tpu.memory_space<vmem>>, %arg8: memref<128x32xf32, #tpu.memory_space<vmem>>, %arg9: memref<4x16x32xf32, #tpu.memory_space<vmem>>) attributes {dimension_semantics = [#tpu.dimension_semantics<parallel>], iteration_bounds = array<i64: 2>, scalar_prefetch = 0 : i64, scratch_operands = 0 : i64, tpu.core_type = #tpu.core_type<tc>, window_params = [{transform_indices = @transform_0, window_bounds = array<i64: 4, 16, 32>}, {pipeline_mode = #tpu.pipeline_mode<synchronous>, transform_indices = @transform_1, window_bounds = array<i64: 96, 32>}, {pipeline_mode = #tpu.pipeline_mode<synchronous>, transform_indices = @transform_2, window_bounds = array<i64: 32, 64>}, {pipeline_mode = #tpu.pipeline_mode<synchronous>, transform_indices = @transform_3, window_bounds = array<i64: 1, 32>}, {pipeline_mode = #tpu.pipeline_mode<synchronous>, transform_indices = @transform_4, window_bounds = array<i64: 32, 32>}, {pipeline_mode = #tpu.pipeline_mode<synchronous>, transform_indices = @transform_5, window_bounds = array<i64: 1, 32>}, {pipeline_mode = #tpu.pipeline_mode<synchronous>, transform_indices = @transform_6, window_bounds = array<i64: 2, 64, 32>}, {pipeline_mode = #tpu.pipeline_mode<synchronous>, transform_indices = @transform_7, window_bounds = array<i64: 128, 32>}, {transform_indices = @transform_8, window_bounds = array<i64: 4, 16, 32>}]} {
    %c0 = arith.constant 0 : index
    %c0_0 = arith.constant 0 : index
    %c0_1 = arith.constant 0 : index
    %0 = vector.load %arg1[%c0, %c0_0, %c0_1] : memref<4x16x32xf32, #tpu.memory_space<vmem>>, vector<4x16x32xf32>
    %1 = vector.shape_cast %0 : vector<4x16x32xf32> to vector<64x32xf32>
    %c1_i32 = arith.constant 1 : i32
    %2 = tpu.dynamic_rotate %1 by %c1_i32 dim 0 : vector<64x32xf32>, i32 -> vector<64x32xf32>
    %c0_2 = arith.constant 0 : index
    %c0_3 = arith.constant 0 : index
    %c0_4 = arith.constant 0 : index
    %3 = vector.load %arg7[%c0_2, %c0_3, %c0_4] : memref<2x64x32xf32, #tpu.memory_space<vmem>>, vector<1x64x32xf32>
    %4 = vector.shape_cast %3 : vector<1x64x32xf32> to vector<64x32xf32>
    %5 = arith.mulf %2, %4 : vector<64x32xf32>
    %c63_i32 = arith.constant 63 : i32
    %6 = tpu.dynamic_rotate %1 by %c63_i32 dim 0 : vector<64x32xf32>, i32 -> vector<64x32xf32>
    %c1 = arith.constant 1 : index
    %c0_5 = arith.constant 0 : index
    %c0_6 = arith.constant 0 : index
    %7 = vector.load %arg7[%c1, %c0_5, %c0_6] : memref<2x64x32xf32, #tpu.memory_space<vmem>>, vector<1x64x32xf32>
    %8 = vector.shape_cast %7 : vector<1x64x32xf32> to vector<64x32xf32>
    %9 = arith.mulf %6, %8 : vector<64x32xf32>
    %10 = tpu.concatenate %5, %1, %9 in 1 : vector<64x32xf32>, vector<64x32xf32>, vector<64x32xf32> -> vector<64x96xf32>
    %11 = arith.truncf %10 : vector<64x96xf32> to vector<64x96xbf16>
    %c0_7 = arith.constant 0 : index
    %c0_8 = arith.constant 0 : index
    %12 = vector.load %arg2[%c0_7, %c0_8] : memref<96x32xbf16, #tpu.memory_space<vmem>>, vector<96x32xbf16>
    %cst = arith.constant dense<0.000000e+00> : vector<64x32xf32>
    %13 = tpu.matmul %11, %12, %cst {dimension_numbers = #tpu.dot_dimension_numbers<[1], [0], [0], [1], [0, 0, 1, 1], [], []>} : vector<64x96xbf16>, vector<96x32xbf16>, vector<64x32xf32> -> vector<64x32xf32>
    %c0_9 = arith.constant 0 : index
    %c0_10 = arith.constant 0 : index
    %14 = vector.load %arg4[%c0_9, %c0_10] : memref<1x32xf32, #tpu.memory_space<vmem>>, vector<1x32xf32>
    %15 = vector.broadcast %14 : vector<1x32xf32> to vector<64x32xf32>
    %16 = arith.addf %13, %15 : vector<64x32xf32>
    %17 = arith.truncf %1 : vector<64x32xf32> to vector<64x32xbf16>
    %c0_11 = arith.constant 0 : index
    %c0_12 = arith.constant 0 : index
    %18 = vector.load %arg3[%c0_11, %c0_12] : memref<32x64xbf16, #tpu.memory_space<vmem>>, vector<32x64xbf16>
    %cst_13 = arith.constant dense<0.000000e+00> : vector<64x64xf32>
    %19 = tpu.matmul %17, %18, %cst_13 {dimension_numbers = #tpu.dot_dimension_numbers<[1], [0], [0], [1], [0, 0, 1, 1], [], []>} : vector<64x32xbf16>, vector<32x64xbf16>, vector<64x64xf32> -> vector<64x64xf32>
    %20 = vector.extract_strided_slice %19 {offsets = [0, 0], sizes = [64, 32], strides = [1, 1]} : vector<64x64xf32> to vector<64x32xf32>
    %21 = arith.truncf %20 : vector<64x32xf32> to vector<64x32xbf16>
    %22 = vector.shape_cast %21 : vector<64x32xbf16> to vector<4x16x32xbf16>
    %23 = vector.extract_strided_slice %19 {offsets = [0, 32], sizes = [64, 32], strides = [1, 1]} : vector<64x64xf32> to vector<64x32xf32>
    %24 = arith.truncf %23 : vector<64x32xf32> to vector<64x32xbf16>
    %25 = vector.shape_cast %24 : vector<64x32xbf16> to vector<4x16x32xbf16>
    %c0_14 = arith.constant 0 : index
    %c0_15 = arith.constant 0 : index
    %26 = vector.load %arg8[%c0_14, %c0_15] : memref<128x32xf32, #tpu.memory_space<vmem>>, vector<128x32xf32>
    %27 = vector.shape_cast %16 : vector<64x32xf32> to vector<4x1x16x32xf32>
    %28 = vector.shape_cast %27 : vector<4x1x16x32xf32> to vector<4x1x16x32xf32>
    %29 = vector.broadcast %28 : vector<4x1x16x32xf32> to vector<4x8x16x32xf32>
    %30 = vector.shape_cast %29 : vector<4x8x16x32xf32> to vector<4x128x32xf32>
    %31 = vector.shape_cast %26 : vector<128x32xf32> to vector<1x128x32xf32>
    %32 = vector.broadcast %31 : vector<1x128x32xf32> to vector<4x128x32xf32>
    %33 = arith.mulf %30, %32 : vector<4x128x32xf32>
    %34 = arith.truncf %33 : vector<4x128x32xf32> to vector<4x128x32xbf16>
    %cst_16 = arith.constant dense<0.000000e+00> : vector<4x128x16xf32>
    %35 = tpu.matmul %34, %22, %cst_16 {dimension_numbers = #tpu.dot_dimension_numbers<[2], [2], [1], [1], [0, 0, 0, 1, 1, 1], [0], [0]>} : vector<4x128x32xbf16>, vector<4x16x32xbf16>, vector<4x128x16xf32> -> vector<4x128x16xf32>
    %cst_17 = arith.constant 5.000000e-01 : f32
    %36 = vector.broadcast %cst_17 : f32 to vector<4x128x16xf32>
    %37 = arith.mulf %35, %36 : vector<4x128x16xf32>
    %cst_18 = arith.constant dense<0xFF800000> : vector<4x128xf32>
    %38 = vector.multi_reduction <maximumf>, %37, %cst_18 [2] : vector<4x128x16xf32> to vector<4x128xf32>
    %39 = vector.shape_cast %38 : vector<4x128xf32> to vector<4x128x1xf32>
    %40 = vector.broadcast %39 : vector<4x128x1xf32> to vector<4x128x16xf32>
    %41 = arith.subf %37, %40 : vector<4x128x16xf32>
    %42 = math.exp %41 : vector<4x128x16xf32>
    %cst_19 = arith.constant dense<0.000000e+00> : vector<4x128xf32>
    %43 = vector.multi_reduction <add>, %42, %cst_19 [2] : vector<4x128x16xf32> to vector<4x128xf32>
    %44 = vector.shape_cast %43 : vector<4x128xf32> to vector<4x128x1xf32>
    %45 = tpu.reciprocal %44 {approx = true} : vector<4x128x1xf32> -> vector<4x128x1xf32>
    %46 = vector.broadcast %45 : vector<4x128x1xf32> to vector<4x128x16xf32>
    %47 = arith.mulf %42, %46 : vector<4x128x16xf32>
    %48 = arith.truncf %47 : vector<4x128x16xf32> to vector<4x128x16xbf16>
    %cst_20 = arith.constant dense<0.000000e+00> : vector<4x128x32xf32>
    %49 = tpu.matmul %48, %25, %cst_20 {dimension_numbers = #tpu.dot_dimension_numbers<[2], [1], [1], [2], [0, 0, 0, 1, 1, 2], [0], [0]>} : vector<4x128x16xbf16>, vector<4x16x32xbf16>, vector<4x128x32xf32> -> vector<4x128x32xf32>
    %50 = vector.shape_cast %26 : vector<128x32xf32> to vector<1x128x32xf32>
    %51 = vector.broadcast %50 : vector<1x128x32xf32> to vector<4x128x32xf32>
    %52 = arith.mulf %49, %51 : vector<4x128x32xf32>
    %53 = vector.shape_cast %52 : vector<4x128x32xf32> to vector<4x8x16x32xf32>
    %cst_21 = arith.constant dense<0.000000e+00> : vector<4x16x32xf32>
    %54 = vector.multi_reduction <add>, %53, %cst_21 [1] : vector<4x8x16x32xf32> to vector<4x16x32xf32>
    %55 = vector.shape_cast %54 : vector<4x16x32xf32> to vector<64x32xf32>
    %56 = arith.subf %16, %55 : vector<64x32xf32>
    %57 = arith.truncf %56 : vector<64x32xf32> to vector<64x32xbf16>
    %c0_22 = arith.constant 0 : index
    %c0_23 = arith.constant 0 : index
    %58 = vector.load %arg5[%c0_22, %c0_23] : memref<32x32xbf16, #tpu.memory_space<vmem>>, vector<32x32xbf16>
    %cst_24 = arith.constant dense<0.000000e+00> : vector<64x32xf32>
    %59 = tpu.matmul %57, %58, %cst_24 {dimension_numbers = #tpu.dot_dimension_numbers<[1], [0], [0], [1], [0, 0, 1, 1], [], []>} : vector<64x32xbf16>, vector<32x32xbf16>, vector<64x32xf32> -> vector<64x32xf32>
    %c0_25 = arith.constant 0 : index
    %c0_26 = arith.constant 0 : index
    %60 = vector.load %arg6[%c0_25, %c0_26] : memref<1x32xf32, #tpu.memory_space<vmem>>, vector<1x32xf32>
    %61 = vector.broadcast %60 : vector<1x32xf32> to vector<64x32xf32>
    %62 = arith.addf %59, %61 : vector<64x32xf32>
    %63 = vector.shape_cast %62 : vector<64x32xf32> to vector<4x16x32xf32>
    %c0_27 = arith.constant 0 : index
    %c0_28 = arith.constant 0 : index
    %c0_29 = arith.constant 0 : index
    %64 = vector.load %arg9[%c0_27, %c0_28, %c0_29] : memref<4x16x32xf32, #tpu.memory_space<vmem>>, vector<4x16x32xf32>
    tpu.vector_store %arg9[%c0_27, %c0_28, %c0_29], %63 {strides = array<i32>} : memref<4x16x32xf32, #tpu.memory_space<vmem>>, vector<4x16x32xf32>,
    return
  }
  func.func @transform_0(%arg0: i32) -> (i32, i32, i32) {
    %c0_i32 = arith.constant 0 : i32
    %c0_i32_0 = arith.constant 0 : i32
    %c0_i32_1 = arith.constant 0 : i32
    return %arg0, %c0_i32, %c0_i32_0 : i32, i32, i32
  }
  func.func @transform_1(%arg0: i32) -> (i32, i32) {
    %c0_i32 = arith.constant 0 : i32
    %c0_i32_0 = arith.constant 0 : i32
    %c0_i32_1 = arith.constant 0 : i32
    return %c0_i32, %c0_i32_0 : i32, i32
  }
  func.func @transform_2(%arg0: i32) -> (i32, i32) {
    %c0_i32 = arith.constant 0 : i32
    %c0_i32_0 = arith.constant 0 : i32
    %c0_i32_1 = arith.constant 0 : i32
    return %c0_i32, %c0_i32_0 : i32, i32
  }
  func.func @transform_3(%arg0: i32) -> (i32, i32) {
    %c0_i32 = arith.constant 0 : i32
    %c0_i32_0 = arith.constant 0 : i32
    %c0_i32_1 = arith.constant 0 : i32
    return %c0_i32, %c0_i32_0 : i32, i32
  }
  func.func @transform_4(%arg0: i32) -> (i32, i32) {
    %c0_i32 = arith.constant 0 : i32
    %c0_i32_0 = arith.constant 0 : i32
    %c0_i32_1 = arith.constant 0 : i32
    return %c0_i32, %c0_i32_0 : i32, i32
  }
  func.func @transform_5(%arg0: i32) -> (i32, i32) {
    %c0_i32 = arith.constant 0 : i32
    %c0_i32_0 = arith.constant 0 : i32
    %c0_i32_1 = arith.constant 0 : i32
    return %c0_i32, %c0_i32_0 : i32, i32
  }
  func.func @transform_6(%arg0: i32) -> (i32, i32, i32) {
    %c0_i32 = arith.constant 0 : i32
    %c0_i32_0 = arith.constant 0 : i32
    %c0_i32_1 = arith.constant 0 : i32
    %c0_i32_2 = arith.constant 0 : i32
    return %c0_i32, %c0_i32_0, %c0_i32_1 : i32, i32, i32
  }
  func.func @transform_7(%arg0: i32) -> (i32, i32) {
    %c0_i32 = arith.constant 0 : i32
    %c0_i32_0 = arith.constant 0 : i32
    %c0_i32_1 = arith.constant 0 : i32
    return %c0_i32, %c0_i32_0 : i32, i32
  }
  func.func @transform_8(%arg0: i32) -> (i32, i32, i32) {
    %c0_i32 = arith.constant 0 : i32
    %c0_i32_0 = arith.constant 0 : i32
    %c0_i32_1 = arith.constant 0 : i32
    return %arg0, %c0_i32, %c0_i32_0 : i32, i32, i32
  }
}

</mosaic_0001>

<llo_original>
// kernel: tpu_custom_call.1
$region0: #{tpu_custom_call.1}
  #allocation0 [shape = 'u32[]', space=smem, size = 0x4, offset = 0x4, fixed_abs, tag = 'smem constant byte address 0x4 - core index']
  #allocation1 [shape = 'u32[72,128]{1,0:T(1,128)}', space=vmem, size = 0x9000, scoped, tag = 'internal scratch']
  %s0 = inlined_call_operand.vmem [shape: f32[8,16,32], index: 0, kind: input, shape index: {}]
  %s1 = inlined_call_operand.vmem [shape: bf16[96,32], index: 1, kind: input, shape index: {}]
  %s2 = inlined_call_operand.vmem [shape: bf16[32,64], index: 2, kind: input, shape index: {}]
  %s3 = inlined_call_operand.vmem [shape: f32[1,32], index: 3, kind: input, shape index: {}]
  %s4 = inlined_call_operand.vmem [shape: bf16[32,32], index: 4, kind: input, shape index: {}]
  %s5 = inlined_call_operand.vmem [shape: f32[1,32], index: 5, kind: input, shape index: {}]
  %s6 = inlined_call_operand.vmem [shape: f32[2,64,32], index: 6, kind: input, shape index: {}]
  %s7 = inlined_call_operand.vmem [shape: f32[128,32], index: 7, kind: input, shape index: {}]
  %s8 = inlined_call_operand.hbm [shape: f32[8,16,32], index: 8, kind: output, shape index: {}]
  %s9 = sld [smem:[#allocation0]]
  $region65: #{tpu_custom_call.1} parent=0
    _
  %s11 = ssub.s32 1, %s9
  %s12 = scalar_select 0, %s11, %s9
  $region1: #{tpu_custom_call.1} parent=0
    #allocation2 [shape = 'u8[65536]{0}', space=vmem, size = 0x10000, scoped, tag = 'output window, operand 0']
    #allocation3 [shape = 's32[2]{0}', space=sflag, size = 0x8, scoped, tag = 'scoped memory for tpu_custom_call.1']
    %13 = vsyncpa [#allocation3], 0
    %s14 = scalar_lea.sflag [#allocation3], 1
    %15 = vsyncpa %s14, 0
    loop: start=0, step=1, limit=4
    $region2: #{tpu_custom_call.1} parent=1 // loop_pre_header
      _
    $region3: #{tpu_custom_call.1} parent=1 // loop_header
      %s17 = sphi 0, %s21
      %p18 = scmp.ge.s32.totalorder %s17, 4
      %s27 = sphi 0, %s29
      %s30 = sphi 0, %s27
      %s31 = sphi 0, %s30
      %s47 = sphi 0, %s31
      %s51 = sphi 0, %s51
      %s53 = sphi 0, %s51
      %s54 = sphi 0, %s53
      %s68 = sphi 0, %s54
      %s72 = sphi 0, %s72
      %s74 = sphi 0, %s72
      %s75 = sphi 0, %s74
      %s89 = sphi 0, %s75
      %s93 = sphi 0, %s93
      %s95 = sphi 0, %s93
      %s96 = sphi 0, %s95
      %s110 = sphi 0, %s96
      %s114 = sphi 0, %s114
      %s116 = sphi 0, %s114
      %s117 = sphi 0, %s116
      %s131 = sphi 0, %s117
      %s135 = sphi 0, %s135
      %s137 = sphi 0, %s135
      %s138 = sphi 0, %s137
      %s152 = sphi 0, %s138
      %s156 = sphi 0, %s156
      %s158 = sphi 0, %s156
      %s159 = sphi 0, %s158
      %s173 = sphi 0, %s159
      %s177 = sphi 0, %s177
      %s179 = sphi 0, %s177
      %s180 = sphi 0, %s179
      %s194 = sphi 0, %s180
      %s200 = sphi 0, %s202
      %s203 = sphi 0, %s200
      %s204 = sphi 0, %s203
      %s220 = sphi 0, %s204
    $region4: #{tpu_custom_call.1} parent=1 // loop_header_branch
      %20 = sbr.rel (%p18) target = $region8
    $region5: #{tpu_custom_call.1} parent=1 // loop_body
      %s22 = ssub.s32 %s17, 1
      %s23 = ssub.s32 %s17, 2
      %s24 = sadd.s32 %s17, 1
      %s25 = ssub.s32 %s17, %s24
      %p26 = scmp.eq.s32.totalorder %s25, 0
      %s28 = sadd.s32 %s27, 1
      %s29 = scalar_select %p26, %s27, %s28
      %p32 = pneg %p26
      %p33 = scmp.eq.s32.totalorder %s17, 1
      %p34 = por %p32, %p33
      %p35 = scmp.ne.s32.totalorder %s27, %s30
      %p36 = scmp.eq.s32.totalorder %s17, 0
      %p37 = por %p35, %p36
      %p38 = scmp.ne.s32.totalorder %s27, %s30
      %p39 = scmp.eq.s32.totalorder %s22, 1
      %p40 = por %p38, %p39
      %p41 = scmp.ne.s32.totalorder %s30, %s31
      %p42 = scmp.eq.s32.totalorder %s22, 0
      %p43 = por %p41, %p42
      %p44 = scmp.ne.s32.totalorder %s30, %s31
      %p45 = scmp.eq.s32.totalorder %s23, 1
      %p46 = por %p44, %p45
      %p48 = scmp.ne.s32.totalorder %s31, %s47
      %p49 = scmp.eq.s32.totalorder %s23, 0
      %p50 = por %p48, %p49
      %s52 = sadd.s32 %s51, 1
      %p55 = scmp.eq.s32.totalorder %s17, 1
      %p56 = scmp.ne.s32.totalorder %s51, %s53
      %p57 = scmp.eq.s32.totalorder %s17, 0
      %p58 = por %p56, %p57
      %p59 = scmp.ne.s32.totalorder %s51, %s53
      %p60 = scmp.eq.s32.totalorder %s22, 1
      %p61 = por %p59, %p60
      %p62 = scmp.ne.s32.totalorder %s53, %s54
      %p63 = scmp.eq.s32.totalorder %s22, 0
      %p64 = por %p62, %p63
      %p65 = scmp.ne.s32.totalorder %s53, %s54
      %p66 = scmp.eq.s32.totalorder %s23, 1
      %p67 = por %p65, %p66
      %p69 = scmp.ne.s32.totalorder %s54, %s68
      %p70 = scmp.eq.s32.totalorder %s23, 0
      %p71 = por %p69, %p70
      %s73 = sadd.s32 %s72, 1
      %p76 = scmp.eq.s32.totalorder %s17, 1
      %p77 = scmp.ne.s32.totalorder %s72, %s74
      %p78 = scmp.eq.s32.totalorder %s17, 0
      %p79 = por %p77, %p78
      %p80 = scmp.ne.s32.totalorder %s72, %s74
      %p81 = scmp.eq.s32.totalorder %s22, 1
      %p82 = por %p80, %p81
      %p83 = scmp.ne.s32.totalorder %s74, %s75
      %p84 = scmp.eq.s32.totalorder %s22, 0
      %p85 = por %p83, %p84
      %p86 = scmp.ne.s32.totalorder %s74, %s75
      %p87 = scmp.eq.s32.totalorder %s23, 1
      %p88 = por %p86, %p87
      %p90 = scmp.ne.s32.totalorder %s75, %s89
      %p91 = scmp.eq.s32.totalorder %s23, 0
      %p92 = por %p90, %p91
      %s94 = sadd.s32 %s93, 1
      %p97 = scmp.eq.s32.totalorder %s17, 1
      %p98 = scmp.ne.s32.totalorder %s93, %s95
      %p99 = scmp.eq.s32.totalorder %s17, 0
      %p100 = por %p98, %p99
      %p101 = scmp.ne.s32.totalorder %s93, %s95
      %p102 = scmp.eq.s32.totalorder %s22, 1
      %p103 = por %p101, %p102
      %p104 = scmp.ne.s32.totalorder %s95, %s96
      %p105 = scmp.eq.s32.totalorder %s22, 0
      %p106 = por %p104, %p105
      %p107 = scmp.ne.s32.totalorder %s95, %s96
      %p108 = scmp.eq.s32.totalorder %s23, 1
      %p109 = por %p107, %p108
      %p111 = scmp.ne.s32.totalorder %s96, %s110
      %p112 = scmp.eq.s32.totalorder %s23, 0
      %p113 = por %p111, %p112
      %s115 = sadd.s32 %s114, 1
      %p118 = scmp.eq.s32.totalorder %s17, 1
      %p119 = scmp.ne.s32.totalorder %s114, %s116
      %p120 = scmp.eq.s32.totalorder %s17, 0
      %p121 = por %p119, %p120
      %p122 = scmp.ne.s32.totalorder %s114, %s116
      %p123 = scmp.eq.s32.totalorder %s22, 1
      %p124 = por %p122, %p123
      %p125 = scmp.ne.s32.totalorder %s116, %s117
      %p126 = scmp.eq.s32.totalorder %s22, 0
      %p127 = por %p125, %p126
      %p128 = scmp.ne.s32.totalorder %s116, %s117
      %p129 = scmp.eq.s32.totalorder %s23, 1
      %p130 = por %p128, %p129
      %p132 = scmp.ne.s32.totalorder %s117, %s131
      %p133 = scmp.eq.s32.totalorder %s23, 0
      %p134 = por %p132, %p133
      %s136 = sadd.s32 %s135, 1
      %p139 = scmp.eq.s32.totalorder %s17, 1
      %p140 = scmp.ne.s32.totalorder %s135, %s137
      %p141 = scmp.eq.s32.totalorder %s17, 0
      %p142 = por %p140, %p141
      %p143 = scmp.ne.s32.totalorder %s135, %s137
      %p144 = scmp.eq.s32.totalorder %s22, 1
      %p145 = por %p143, %p144
      %p146 = scmp.ne.s32.totalorder %s137, %s138
      %p147 = scmp.eq.s32.totalorder %s22, 0
      %p148 = por %p146, %p147
      %p149 = scmp.ne.s32.totalorder %s137, %s138
      %p150 = scmp.eq.s32.totalorder %s23, 1
      %p151 = por %p149, %p150
      %p153 = scmp.ne.s32.totalorder %s138, %s152
      %p154 = scmp.eq.s32.totalorder %s23, 0
      %p155 = por %p153, %p154
      %s157 = sadd.s32 %s156, 1
      %p160 = scmp.eq.s32.totalorder %s17, 1
      %p161 = scmp.ne.s32.totalorder %s156, %s158
      %p162 = scmp.eq.s32.totalorder %s17, 0
      %p163 = por %p161, %p162
      %p164 = scmp.ne.s32.totalorder %s156, %s158
      %p165 = scmp.eq.s32.totalorder %s22, 1
      %p166 = por %p164, %p165
      %p167 = scmp.ne.s32.totalorder %s158, %s159
      %p168 = scmp.eq.s32.totalorder %s22, 0
      %p169 = por %p167, %p168
      %p170 = scmp.ne.s32.totalorder %s158, %s159
      %p171 = scmp.eq.s32.totalorder %s23, 1
      %p172 = por %p170, %p171
      %p174 = scmp.ne.s32.totalorder %s159, %s173
      %p175 = scmp.eq.s32.totalorder %s23, 0
      %p176 = por %p174, %p175
      %s178 = sadd.s32 %s177, 1
      %p181 = scmp.eq.s32.totalorder %s17, 1
      %p182 = scmp.ne.s32.totalorder %s177, %s179
      %p183 = scmp.eq.s32.totalorder %s17, 0
      %p184 = por %p182, %p183
      %p185 = scmp.ne.s32.totalorder %s177, %s179
      %p186 = scmp.eq.s32.totalorder %s22, 1
      %p187 = por %p185, %p186
      %p188 = scmp.ne.s32.totalorder %s179, %s180
      %p189 = scmp.eq.s32.totalorder %s22, 0
      %p190 = por %p188, %p189
      %p191 = scmp.ne.s32.totalorder %s179, %s180
      %p192 = scmp.eq.s32.totalorder %s23, 1
      %p193 = por %p191, %p192
      %p195 = scmp.ne.s32.totalorder %s180, %s194
      %p196 = scmp.eq.s32.totalorder %s23, 0
      %p197 = por %p195, %p196
      %s198 = ssub.s32 %s17, %s24
      %p199 = scmp.eq.s32.totalorder %s198, 0
      %s201 = sadd.s32 %s200, 1
      %s202 = scalar_select %p199, %s200, %s201
      %p205 = pneg %p199
      %p206 = scmp.eq.s32.totalorder %s17, 1
      %p207 = por %p205, %p206
      %p208 = scmp.ne.s32.totalorder %s200, %s203
      %p209 = scmp.eq.s32.totalorder %s17, 0
      %p210 = por %p208, %p209
      %p211 = scmp.ne.s32.totalorder %s200, %s203
      %p212 = scmp.eq.s32.totalorder %s22, 1
      %p213 = por %p211, %p212
      %p214 = scmp.ne.s32.totalorder %s203, %s204
      %p215 = scmp.eq.s32.totalorder %s22, 0
      %p216 = por %p214, %p215
      %p217 = scmp.ne.s32.totalorder %s203, %s204
      %p218 = scmp.eq.s32.totalorder %s23, 1
      %p219 = por %p217, %p218
      %p221 = scmp.ne.s32.totalorder %s204, %s220
      %p222 = scmp.eq.s32.totalorder %s23, 0
      %p223 = por %p221, %p222
      %p224 = scmp.le.s32.totalorder 1, %s17
      %p225 = scmp.lt.s32.totalorder %s17, 3
      %p226 = pnand %p224, %p225
      %p227 = pneg %p226
      // Predicated region
      $region9: #{tpu_custom_call.1} parent=5 // pred_check
        _
      $region10: #{tpu_custom_call.1} parent=5 // pred_check_branch
        %229 = sbr.rel (%p226) target = $region12
      $region11: #{tpu_custom_call.1} parent=5 // pred_region
        %s230 = ssub.s32 %s17, 1
        // Predicated region
        $region13: #{tpu_custom_call.1} parent=11 // pred_check
          %p231 = pneg %p64
        $region14: #{tpu_custom_call.1} parent=11 // pred_check_branch
          %233 = sbr.rel (%p231) target = $region16
        $region15: #{tpu_custom_call.1} parent=11 // pred_region
          _
        $region16: #{tpu_custom_call.1} parent=11 // pred_fallthru
          _
        // Predicated region
        $region17: #{tpu_custom_call.1} parent=11 // pred_check
          %p234 = pneg %p85
        $region18: #{tpu_custom_call.1} parent=11 // pred_check_branch
          %236 = sbr.rel (%p234) target = $region20
        $region19: #{tpu_custom_call.1} parent=11 // pred_region
          _
        $region20: #{tpu_custom_call.1} parent=11 // pred_fallthru
          _
        // Predicated region
        $region21: #{tpu_custom_call.1} parent=11 // pred_check
          %p237 = pneg %p106
        $region22: #{tpu_custom_call.1} parent=11 // pred_check_branch
          %239 = sbr.rel (%p237) target = $region24
        $region23: #{tpu_custom_call.1} parent=11 // pred_region
          _
        $region24: #{tpu_custom_call.1} parent=11 // pred_fallthru
          _
        // Predicated region
        $region25: #{tpu_custom_call.1} parent=11 // pred_check
          %p240 = pneg %p127
        $region26: #{tpu_custom_call.1} parent=11 // pred_check_branch
          %242 = sbr.rel (%p240) target = $region28
        $region27: #{tpu_custom_call.1} parent=11 // pred_region
          _
        $region28: #{tpu_custom_call.1} parent=11 // pred_fallthru
          _
        // Predicated region
        $region29: #{tpu_custom_call.1} parent=11 // pred_check
          %p243 = pneg %p148
        $region30: #{tpu_custom_call.1} parent=11 // pred_check_branch
          %245 = sbr.rel (%p243) target = $region32
        $region31: #{tpu_custom_call.1} parent=11 // pred_region
          _
        $region32: #{tpu_custom_call.1} parent=11 // pred_fallthru
          _
        // Predicated region
        $region33: #{tpu_custom_call.1} parent=11 // pred_check
          %p246 = pneg %p169
        $region34: #{tpu_custom_call.1} parent=11 // pred_check_branch
          %248 = sbr.rel (%p246) target = $region36
        $region35: #{tpu_custom_call.1} parent=11 // pred_region
          _
        $region36: #{tpu_custom_call.1} parent=11 // pred_fallthru
          _
        // Predicated region
        $region37: #{tpu_custom_call.1} parent=11 // pred_check
          %p249 = pneg %p190
        $region38: #{tpu_custom_call.1} parent=11 // pred_check_branch
          %251 = sbr.rel (%p249) target = $region40
        $region39: #{tpu_custom_call.1} parent=11 // pred_region
          _
        $region40: #{tpu_custom_call.1} parent=11 // pred_fallthru
          _
      $region12: #{tpu_custom_call.1} parent=5 // pred_fallthru
        _
      %p252 = scmp.lt.s32.totalorder %s17, 2
      // Predicated region
      $region41: #{tpu_custom_call.1} parent=5 // pred_check
        %p253 = pneg %p252
      $region42: #{tpu_custom_call.1} parent=5 // pred_check_branch
        %255 = sbr.rel (%p253) target = $region44
      $region43: #{tpu_custom_call.1} parent=5 // pred_region
        // Predicated region
        $region45: #{tpu_custom_call.1} parent=43 // pred_check
          %p256 = pneg %p37
        $region46: #{tpu_custom_call.1} parent=43 // pred_check_branch
          %258 = sbr.rel (%p256) target = $region48
        $region47: #{tpu_custom_call.1} parent=43 // pred_region
          %s259 = smul.u32 4, %s17
          %p260 = scmp.lt.s32.totalorder %s259, 7
          %s261 = scalar_select %p260, %s259, 7
          %s262 = smul.addr %s261, 2
          %s263 = smul.addr %s262, 8
          %s264 = scalar_lea.vmem %s0, %s263
          %s265 = smul.u32 4, %s17
        $region48: #{tpu_custom_call.1} parent=43 // pred_fallthru
          _
      $region44: #{tpu_custom_call.1} parent=5 // pred_fallthru
        _
      %p266 = scmp.le.s32.totalorder 1, %s17
      %p267 = scmp.lt.s32.totalorder %s17, 3
      %p268 = pnand %p266, %p267
      %p269 = pneg %p268
      // Predicated region
      $region49: #{tpu_custom_call.1} parent=5 // pred_check
        _
      $region50: #{tpu_custom_call.1} parent=5 // pred_check_branch
        %271 = sbr.rel (%p268) target = $region52
      $region51: #{tpu_custom_call.1} parent=5 // pred_region
        %s272 = ssub.s32 %s17, 1
        %s273 = smul.u32 4, %s22
        %p274 = scmp.lt.s32.totalorder %s273, 7
        %s275 = scalar_select %p274, %s273, 7
        %s276 = smul.addr %s275, 2
        %s277 = smul.addr %s276, 8
        %s278 = scalar_lea.vmem %s0, %s277
        %p279 = pneg %p43
        %p280 = pneg %p40
        %p281 = pneg %p64
        %p282 = pneg %p61
        %p283 = pneg %p85
        %p284 = pneg %p82
        %p285 = pneg %p106
        %p286 = pneg %p103
        %p287 = pneg %p127
        %p288 = pneg %p124
        %p289 = pneg %p148
        %p290 = pneg %p145
        %p291 = pneg %p169
        %p292 = pneg %p166
        %p293 = pneg %p190
        %p294 = pneg %p187
        %p295 = pneg %p216
        %p296 = pneg %p213
        %s297 = sand.u32 %s203, 1
        %s298 = scalar_lea.sflag [#allocation3], %s297
        %s299 = sand.u32 %s203, 1
        %s300 = smul.addr %s299, 64
        %s301 = scalar_lea.vmem [#allocation2], %s300
        %s302 = smul.u32 4, %s22
        %p303 = scmp.lt.s32.totalorder %s302, 7
        %s304 = scalar_select %p303, %s302, 7
        %s305 = smul.addr %s304, 2
        %s306 = smul.addr %s305, 8
        %s307 = scalar_lea.vmem %s0, %s306
        %s308 = smul.u32 4, %s22
        %s309 = smul.u32 4, %s22
        %v311 = vld [vmem:[%s307] sm:$0xff]
        %v312 = vld [vmem:[%s307 + $0x8] sm:$0xff]
        %v313 = vld [vmem:[%s307 + $0x10] sm:$0xff]
        %v314 = vld [vmem:[%s307 + $0x18] sm:$0xff]
        %v315 = vld [vmem:[%s307 + $0x20] sm:$0xff]
        %v316 = vld [vmem:[%s307 + $0x28] sm:$0xff]
        %v317 = vld [vmem:[%s307 + $0x30] sm:$0xff]
        %v318 = vld [vmem:[%s307 + $0x38] sm:$0xff]
        %v319 = vrot.slane %v311, 7
        %v320 = vrot.slane %v312, 7
        %v321 = vrot.slane %v313, 7
        %v322 = vrot.slane %v314, 7
        %v323 = vrot.slane %v315, 7
        %v324 = vrot.slane %v316, 7
        %v325 = vrot.slane %v317, 7
        %v326 = vrot.slane %v318, 7
        %v327 = vlaneseq
        %v328 = vshrl.u32 %v327, 7
        %vm329 = vcmp.lt.s32.totalorder %v328, 1
        %v330 = vsel %vm329, %v325, %v326
        %v331 = vsel %vm329, %v324, %v325
        %v332 = vsel %vm329, %v323, %v324
        %v333 = vsel %vm329, %v322, %v323
        %v334 = vsel %vm329, %v321, %v322
        %v335 = vsel %vm329, %v320, %v321
        %v336 = vsel %vm329, %v319, %v320
        %v337 = vsel %vm329, %v326, %v319
        %v338 = vld [vmem:[%s6] sm:$0xff]
        %v339 = vld [vmem:[%s6 + $0x8] sm:$0xff]
        %v340 = vld [vmem:[%s6 + $0x10] sm:$0xff]
        %v341 = vld [vmem:[%s6 + $0x18] sm:$0xff]
        %v342 = vld [vmem:[%s6 + $0x20] sm:$0xff]
        %v343 = vld [vmem:[%s6 + $0x28] sm:$0xff]
        %v344 = vld [vmem:[%s6 + $0x30] sm:$0xff]
        %v345 = vld [vmem:[%s6 + $0x38] sm:$0xff]
        %v346 = vmul.f32 %v337, %v338
        %v347 = vmul.f32 %v336, %v339
        %v348 = vmul.f32 %v335, %v340
        %v349 = vmul.f32 %v334, %v341
        %v350 = vmul.f32 %v333, %v342
        %v351 = vmul.f32 %v332, %v343
        %v352 = vmul.f32 %v331, %v344
        %v353 = vmul.f32 %v330, %v345
        %v354 = vrot.slane %v311, 1
        %v355 = vrot.slane %v312, 1
        %v356 = vrot.slane %v313, 1
        %v357 = vrot.slane %v314, 1
        %v358 = vrot.slane %v315, 1
        %v359 = vrot.slane %v316, 1
        %v360 = vrot.slane %v317, 1
        %v361 = vrot.slane %v318, 1
        %vm362 = vcmp.lt.s32.totalorder %v328, 7
        %v363 = vsel %vm362, %v360, %v361
        %v364 = vsel %vm362, %v359, %v360
        %v365 = vsel %vm362, %v358, %v359
        %v366 = vsel %vm362, %v357, %v358
        %v367 = vsel %vm362, %v356, %v357
        %v368 = vsel %vm362, %v355, %v356
        %v369 = vsel %vm362, %v354, %v355
        %v370 = vsel %vm362, %v361, %v354
        %s371 = scalar_lea.vmem %s6, 64
        %v372 = vld [vmem:[%s371] sm:$0xff]
        %v373 = vld [vmem:[%s371 + $0x8] sm:$0xff]
        %v374 = vld [vmem:[%s371 + $0x10] sm:$0xff]
        %v375 = vld [vmem:[%s371 + $0x18] sm:$0xff]
        %v376 = vld [vmem:[%s371 + $0x20] sm:$0xff]
        %v377 = vld [vmem:[%s371 + $0x28] sm:$0xff]
        %v378 = vld [vmem:[%s371 + $0x30] sm:$0xff]
        %v379 = vld [vmem:[%s371 + $0x38] sm:$0xff]
        %v380 = vmul.f32 %v369, %v372
        %v381 = vmul.f32 %v368, %v373
        %v382 = vmul.f32 %v367, %v374
        %v383 = vmul.f32 %v366, %v375
        %v384 = vmul.f32 %v365, %v376
        %v385 = vmul.f32 %v364, %v377
        %v386 = vmul.f32 %v363, %v378
        %v387 = vmul.f32 %v370, %v379
        %396 = vrot.lane.b32.xlu0 %v311, 32
        %v397 = vpop.permute.xlu0 %396
        %398 = vrot.lane.b32.xlu0 %v312, 32
        %v399 = vpop.permute.xlu0 %398
        %400 = vrot.lane.b32.xlu0 %v313, 32
        %v401 = vpop.permute.xlu0 %400
        %402 = vrot.lane.b32.xlu0 %v314, 32
        %v403 = vpop.permute.xlu0 %402
        %404 = vrot.lane.b32.xlu0 %v315, 32
        %v405 = vpop.permute.xlu0 %404
        %406 = vrot.lane.b32.xlu0 %v316, 32
        %v407 = vpop.permute.xlu0 %406
        %408 = vrot.lane.b32.xlu0 %v317, 32
        %v409 = vpop.permute.xlu0 %408
        %410 = vrot.lane.b32.xlu0 %v318, 32
        %v411 = vpop.permute.xlu0 %410
        %428 = vrot.lane.b32.xlu0 %v380, 64
        %v429 = vpop.permute.xlu0 %428
        %430 = vrot.lane.b32.xlu0 %v381, 64
        %v431 = vpop.permute.xlu0 %430
        %432 = vrot.lane.b32.xlu0 %v382, 64
        %v433 = vpop.permute.xlu0 %432
        %434 = vrot.lane.b32.xlu0 %v383, 64
        %v435 = vpop.permute.xlu0 %434
        %436 = vrot.lane.b32.xlu0 %v384, 64
        %v437 = vpop.permute.xlu0 %436
        %438 = vrot.lane.b32.xlu0 %v385, 64
        %v439 = vpop.permute.xlu0 %438
        %440 = vrot.lane.b32.xlu0 %v386, 64
        %v441 = vpop.permute.xlu0 %440
        %442 = vrot.lane.b32.xlu0 %v387, 64
        %v443 = vpop.permute.xlu0 %442
        %vm452 = vcmask 261120
        %v453 = vsel %vm452, %v346, %v397
        %v454 = vsel %vm452, %v347, %v399
        %v455 = vsel %vm452, %v348, %v401
        %v456 = vsel %vm452, %v349, %v403
        %v457 = vsel %vm452, %v350, %v405
        %v458 = vsel %vm452, %v351, %v407
        %v459 = vsel %vm452, %v352, %v409
        %v460 = vsel %vm452, %v353, %v411
        %vm461 = vcmask 523264
        %v462 = vsel %vm461, %v453, %v429
        %v463 = vsel %vm461, %v454, %v431
        %v464 = vsel %vm461, %v455, %v433
        %v465 = vsel %vm461, %v456, %v435
        %v466 = vsel %vm461, %v457, %v437
        %v467 = vsel %vm461, %v458, %v439
        %v468 = vsel %vm461, %v459, %v441
        %v469 = vsel %vm461, %v460, %v443
        %v470 = vpack.c.bf16 %v463, %v462
        %v471 = vpack.c.bf16 %v465, %v464
        %v472 = vpack.c.bf16 %v467, %v466
        %v473 = vpack.c.bf16 %v469, %v468
        %v474 = vld [vmem:[%s1] sm:$0xf]
        %v475 = vld [vmem:[%s1 + $0x4] sm:$0xf]
        %v476 = vld [vmem:[%s1 + $0x8] sm:$0xf]
        %v477 = vld [vmem:[%s1 + $0xc] sm:$0xf]
        %v478 = vld [vmem:[%s1 + $0x10] sm:$0xf]
        %v479 = vld [vmem:[%s1 + $0x14] sm:$0xf]
        %v480 = vld [vmem:[%s1 + $0x18] sm:$0xf]
        %v481 = vld [vmem:[%s1 + $0x1c] sm:$0xf]
        %v482 = vld [vmem:[%s1 + $0x20] sm:$0xf]
        %v483 = vld [vmem:[%s1 + $0x24] sm:$0xf]
        %v484 = vld [vmem:[%s1 + $0x28] sm:$0xf]
        %v485 = vld [vmem:[%s1 + $0x2c] sm:$0xf]
        %v486 = vld [vmem:[%s3] sm:$0x1]
        %v488 = vperm.slane %v486, 0
        %v502 = vunpack.c.l.b16 %v474
        %v503 = vunpack.c.l.b16 %v475
        %v504 = vunpack.c.l.b16 %v476
        %v505 = vunpack.c.l.b16 %v477
        %v506 = vunpack.c.l.b16 %v478
        %v507 = vunpack.c.l.b16 %v479
        %v508 = vunpack.c.l.b16 %v480
        %v509 = vunpack.c.l.b16 %v481
        %v510 = vunpack.c.l.b16 %v482
        %v511 = vunpack.c.l.b16 %v483
        %v512 = vunpack.c.l.b16 %v484
        %v513 = vunpack.c.l.b16 %v485
        %v514 = vpack.c.b16 %v503, %v502
        %v515 = vpack.c.b16 %v505, %v504
        %v516 = vpack.c.b16 %v507, %v506
        %v517 = vpack.c.b16 %v509, %v508
        %v518 = vpack.c.b16 %v511, %v510
        %v519 = vpack.c.b16 %v513, %v512
        %vm526 = vcmask 785408
        %v528 = vsel %vm526, %v470, 0
        %v531 = vsel %vm526, %v471, 0
        %v534 = vsel %vm526, %v472, 0
        %v537 = vsel %vm526, %v473, 0
        %539 = vmatpush.bf16.msra.mxu0 0
        %540 = vmatpush.bf16.msra.mxu0 0
        %541 = vmatpush.bf16.msra.mxu0 %v519
        %542 = vmatpush.bf16.msra.mxu0 %v518
        %543 = vmatpush.bf16.msra.mxu0 %v517
        %544 = vmatpush.bf16.msra.mxu0 %v516
        %545 = vmatpush.bf16.msra.mxu0 %v515
        %546 = vmatpush.bf16.msra.mxu0 %v514
        %547 = vmatmul.bf16.gmra.mxu0 %v528
        %v548 = vpop.f32.mrf.mxu0
        %v549 = vadd.f32 %v488, %v548
        %v550 = vpop.f32.mrf.mxu0
        %v551 = vadd.f32 %v488, %v550
        %552 = vmatmul.bf16.gmra.mxu0 %v531
        %v553 = vpop.f32.mrf.mxu0
        %v554 = vadd.f32 %v488, %v553
        %v555 = vpop.f32.mrf.mxu0
        %v556 = vadd.f32 %v488, %v555
        %557 = vmatmul.bf16.gmra.mxu0 %v534
        %v558 = vpop.f32.mrf.mxu0
        %v559 = vadd.f32 %v488, %v558
        %v560 = vpop.f32.mrf.mxu0
        %v561 = vadd.f32 %v488, %v560
        %562 = vmatmul.bf16.gmra.mxu0 %v537
        %v563 = vpop.f32.mrf.mxu0
        %v564 = vadd.f32 %v488, %v563
        %v565 = vpop.f32.mrf.mxu0
        %v566 = vadd.f32 %v488, %v565
        %567 = vdwg.mxu0
        %v568 = vpack.c.bf16 %v312, %v311
        %v569 = vpack.c.bf16 %v314, %v313
        %v570 = vpack.c.bf16 %v316, %v315
        %v571 = vpack.c.bf16 %v318, %v317
        %v572 = vld [vmem:[%s2] sm:$0xf]
        %v573 = vld [vmem:[%s2 + $0x4] sm:$0xf]
        %v574 = vld [vmem:[%s2 + $0x8] sm:$0xf]
        %v575 = vld [vmem:[%s2 + $0xc] sm:$0xf]
        %v580 = vunpack.c.l.b16 %v572
        %v581 = vunpack.c.l.b16 %v573
        %v582 = vunpack.c.l.b16 %v574
        %v583 = vunpack.c.l.b16 %v575
        %v584 = vpack.c.b16 %v581, %v580
        %v585 = vpack.c.b16 %v583, %v582
        %v589 = vsel %vm452, %v568, 0
        %v592 = vsel %vm452, %v569, 0
        %v595 = vsel %vm452, %v570, 0
        %v598 = vsel %vm452, %v571, 0
        %600 = vmatpush.bf16.msra.mxu0 0
        %601 = vmatpush.bf16.msra.mxu0 0
        %602 = vmatpush.bf16.msra.mxu0 0
        %603 = vmatpush.bf16.msra.mxu0 0
        %604 = vmatpush.bf16.msra.mxu0 0
        %605 = vmatpush.bf16.msra.mxu0 0
        %606 = vmatpush.bf16.msra.mxu0 %v585
        %607 = vmatpush.bf16.msra.mxu0 %v584
        %608 = vmatmul.bf16.gmra.mxu0 %v589
        %v609 = vpop.f32.mrf.mxu0
        %v610 = vadd.f32 0.0, %v609
        %v611 = vpop.f32.mrf.mxu0
        %v612 = vadd.f32 0.0, %v611
        %613 = vmatmul.bf16.gmra.mxu0 %v592
        %v614 = vpop.f32.mrf.mxu0
        %v615 = vadd.f32 0.0, %v614
        %v616 = vpop.f32.mrf.mxu0
        %v617 = vadd.f32 0.0, %v616
        %618 = vmatmul.bf16.gmra.mxu0 %v595
        %v619 = vpop.f32.mrf.mxu0
        %v620 = vadd.f32 0.0, %v619
        %v621 = vpop.f32.mrf.mxu0
        %v622 = vadd.f32 0.0, %v621
        %623 = vmatmul.bf16.gmra.mxu0 %v598
        %v624 = vpop.f32.mrf.mxu0
        %v625 = vadd.f32 0.0, %v624
        %v626 = vpop.f32.mrf.mxu0
        %v627 = vadd.f32 0.0, %v626
        %628 = vdwg.mxu0
        %v629 = vpack.c.bf16 %v610, %v610
        %v630 = vpack.c.bf16 %v612, %v612
        %v631 = vpack.c.bf16 %v615, %v615
        %v632 = vpack.c.bf16 %v617, %v617
        %v633 = vpack.c.bf16 %v620, %v620
        %v634 = vpack.c.bf16 %v622, %v622
        %v635 = vpack.c.bf16 %v625, %v625
        %v636 = vpack.c.bf16 %v627, %v627
        %v637 = vld [vmem:[%s7] sm:$0xff]
        %v638 = vld [vmem:[%s7 + $0x8] sm:$0xff]
        %v639 = vld [vmem:[%s7 + $0x10] sm:$0xff]
        %v640 = vld [vmem:[%s7 + $0x18] sm:$0xff]
        %v641 = vld [vmem:[%s7 + $0x20] sm:$0xff]
        %v642 = vld [vmem:[%s7 + $0x28] sm:$0xff]
        %v643 = vld [vmem:[%s7 + $0x30] sm:$0xff]
        %v644 = vld [vmem:[%s7 + $0x38] sm:$0xff]
        %v645 = vld [vmem:[%s7 + $0x40] sm:$0xff]
        %v646 = vld [vmem:[%s7 + $0x48] sm:$0xff]
        %v647 = vld [vmem:[%s7 + $0x50] sm:$0xff]
        %v648 = vld [vmem:[%s7 + $0x58] sm:$0xff]
        %v649 = vld [vmem:[%s7 + $0x60] sm:$0xff]
        %v650 = vld [vmem:[%s7 + $0x68] sm:$0xff]
        %v651 = vld [vmem:[%s7 + $0x70] sm:$0xff]
        %v652 = vld [vmem:[%s7 + $0x78] sm:$0xff]
        %v653 = vmul.f32 %v549, %v637
        %v654 = vmul.f32 %v551, %v638
        %v655 = vmul.f32 %v549, %v639
        %v656 = vmul.f32 %v551, %v640
        %v657 = vmul.f32 %v549, %v641
        %v658 = vmul.f32 %v551, %v642
        %v659 = vmul.f32 %v549, %v643
        %v660 = vmul.f32 %v551, %v644
        %v661 = vmul.f32 %v549, %v645
        %v662 = vmul.f32 %v551, %v646
        %v663 = vmul.f32 %v549, %v647
        %v664 = vmul.f32 %v551, %v648
        %v665 = vmul.f32 %v549, %v649
        %v666 = vmul.f32 %v551, %v650
        %v667 = vmul.f32 %v549, %v651
        %v668 = vmul.f32 %v551, %v652
        %v669 = vmul.f32 %v554, %v637
        %v670 = vmul.f32 %v556, %v638
        %v671 = vmul.f32 %v554, %v639
        %v672 = vmul.f32 %v556, %v640
        %v673 = vmul.f32 %v554, %v641
        %v674 = vmul.f32 %v556, %v642
        %v675 = vmul.f32 %v554, %v643
        %v676 = vmul.f32 %v556, %v644
        %v677 = vmul.f32 %v554, %v645
        %v678 = vmul.f32 %v556, %v646
        %v679 = vmul.f32 %v554, %v647
        %v680 = vmul.f32 %v556, %v648
        %v681 = vmul.f32 %v554, %v649
        %v682 = vmul.f32 %v556, %v650
        %v683 = vmul.f32 %v554, %v651
        %v684 = vmul.f32 %v556, %v652
        %v685 = vmul.f32 %v559, %v637
        %v686 = vmul.f32 %v561, %v638
        %v687 = vmul.f32 %v559, %v639
        %v688 = vmul.f32 %v561, %v640
        %v689 = vmul.f32 %v559, %v641
        %v690 = vmul.f32 %v561, %v642
        %v691 = vmul.f32 %v559, %v643
        %v692 = vmul.f32 %v561, %v644
        %v693 = vmul.f32 %v559, %v645
        %v694 = vmul.f32 %v561, %v646
        %v695 = vmul.f32 %v559, %v647
        %v696 = vmul.f32 %v561, %v648
        %v697 = vmul.f32 %v559, %v649
        %v698 = vmul.f32 %v561, %v650
        %v699 = vmul.f32 %v559, %v651
        %v700 = vmul.f32 %v561, %v652
        %v701 = vmul.f32 %v564, %v637
        %v702 = vmul.f32 %v566, %v638
        %v703 = vmul.f32 %v564, %v639
        %v704 = vmul.f32 %v566, %v640
        %v705 = vmul.f32 %v564, %v641
        %v706 = vmul.f32 %v566, %v642
        %v707 = vmul.f32 %v564, %v643
        %v708 = vmul.f32 %v566, %v644
        %v709 = vmul.f32 %v564, %v645
        %v710 = vmul.f32 %v566, %v646
        %v711 = vmul.f32 %v564, %v647
        %v712 = vmul.f32 %v566, %v648
        %v713 = vmul.f32 %v564, %v649
        %v714 = vmul.f32 %v566, %v650
        %v715 = vmul.f32 %v564, %v651
        %v716 = vmul.f32 %v566, %v652
        %v717 = vpack.c.bf16 %v653, %v653
        %v718 = vpack.c.bf16 %v654, %v654
        %v719 = vpack.c.bf16 %v655, %v655
        %v720 = vpack.c.bf16 %v656, %v656
        %v721 = vpack.c.bf16 %v657, %v657
        %v722 = vpack.c.bf16 %v658, %v658
        %v723 = vpack.c.bf16 %v659, %v659
        %v724 = vpack.c.bf16 %v660, %v660
        %v725 = vpack.c.bf16 %v661, %v661
        %v726 = vpack.c.bf16 %v662, %v662
        %v727 = vpack.c.bf16 %v663, %v663
        %v728 = vpack.c.bf16 %v664, %v664
        %v729 = vpack.c.bf16 %v665, %v665
        %v730 = vpack.c.bf16 %v666, %v666
        %v731 = vpack.c.bf16 %v667, %v667
        %v732 = vpack.c.bf16 %v668, %v668
        %v733 = vpack.c.bf16 %v669, %v669
        %v734 = vpack.c.bf16 %v670, %v670
        %v735 = vpack.c.bf16 %v671, %v671
        %v736 = vpack.c.bf16 %v672, %v672
        %v737 = vpack.c.bf16 %v673, %v673
        %v738 = vpack.c.bf16 %v674, %v674
        %v739 = vpack.c.bf16 %v675, %v675
        %v740 = vpack.c.bf16 %v676, %v676
        %v741 = vpack.c.bf16 %v677, %v677
        %v742 = vpack.c.bf16 %v678, %v678
        %v743 = vpack.c.bf16 %v679, %v679
        %v744 = vpack.c.bf16 %v680, %v680
        %v745 = vpack.c.bf16 %v681, %v681
        %v746 = vpack.c.bf16 %v682, %v682
        %v747 = vpack.c.bf16 %v683, %v683
        %v748 = vpack.c.bf16 %v684, %v684
        %v749 = vpack.c.bf16 %v685, %v685
        %v750 = vpack.c.bf16 %v686, %v686
        %v751 = vpack.c.bf16 %v687, %v687
        %v752 = vpack.c.bf16 %v688, %v688
        %v753 = vpack.c.bf16 %v689, %v689
        %v754 = vpack.c.bf16 %v690, %v690
        %v755 = vpack.c.bf16 %v691, %v691
        %v756 = vpack.c.bf16 %v692, %v692
        %v757 = vpack.c.bf16 %v693, %v693
        %v758 = vpack.c.bf16 %v694, %v694
        %v759 = vpack.c.bf16 %v695, %v695
        %v760 = vpack.c.bf16 %v696, %v696
        %v761 = vpack.c.bf16 %v697, %v697
        %v762 = vpack.c.bf16 %v698, %v698
        %v763 = vpack.c.bf16 %v699, %v699
        %v764 = vpack.c.bf16 %v700, %v700
        %v765 = vpack.c.bf16 %v701, %v701
        %v766 = vpack.c.bf16 %v702, %v702
        %v767 = vpack.c.bf16 %v703, %v703
        %v768 = vpack.c.bf16 %v704, %v704
        %v769 = vpack.c.bf16 %v705, %v705
        %v770 = vpack.c.bf16 %v706, %v706
        %v771 = vpack.c.bf16 %v707, %v707
        %v772 = vpack.c.bf16 %v708, %v708
        %v773 = vpack.c.bf16 %v709, %v709
        %v774 = vpack.c.bf16 %v710, %v710
        %v775 = vpack.c.bf16 %v711, %v711
        %v776 = vpack.c.bf16 %v712, %v712
        %v777 = vpack.c.bf16 %v713, %v713
        %v778 = vpack.c.bf16 %v714, %v714
        %v779 = vpack.c.bf16 %v715, %v715
        %v780 = vpack.c.bf16 %v716, %v716
        %v797 = vunpack.c.l.b16 %v717
        %v798 = vunpack.c.l.b16 %v718
        %v799 = vunpack.c.l.b16 %v719
        %v800 = vunpack.c.l.b16 %v720
        %v801 = vunpack.c.l.b16 %v721
        %v802 = vunpack.c.l.b16 %v722
        %v803 = vunpack.c.l.b16 %v723
        %v804 = vunpack.c.l.b16 %v724
        %v805 = vunpack.c.l.b16 %v725
        %v806 = vunpack.c.l.b16 %v726
        %v807 = vunpack.c.l.b16 %v727
        %v808 = vunpack.c.l.b16 %v728
        %v809 = vunpack.c.l.b16 %v729
        %v810 = vunpack.c.l.b16 %v730
        %v811 = vunpack.c.l.b16 %v731
        %v812 = vunpack.c.l.b16 %v732
        %v813 = vpack.c.b16 %v798, %v797
        %v814 = vpack.c.b16 %v800, %v799
        %v815 = vpack.c.b16 %v802, %v801
        %v816 = vpack.c.b16 %v804, %v803
        %v817 = vpack.c.b16 %v806, %v805
        %v818 = vpack.c.b16 %v808, %v807
        %v819 = vpack.c.b16 %v810, %v809
        %v820 = vpack.c.b16 %v812, %v811
        %v823 = vunpack.c.l.b16 %v629
        %v824 = vunpack.c.l.b16 %v630
        %v825 = vpack.c.b16 %v824, %v823
        %v827 = vsel %vm452, %v813, 0
        %v830 = vsel %vm452, %v814, 0
        %v833 = vsel %vm452, %v815, 0
        %v836 = vsel %vm452, %v816, 0
        %v839 = vsel %vm452, %v817, 0
        %v842 = vsel %vm452, %v818, 0
        %v845 = vsel %vm452, %v819, 0
        %v848 = vsel %vm452, %v820, 0
        %v851 = vsel %vm452, %v825, 0
        %853 = vmatpush.bf16.xpose.msra.mxu0 0
        %854 = vmatpush.bf16.xpose.msra.mxu0 0
        %855 = vmatpush.bf16.xpose.msra.mxu0 0
        %856 = vmatpush.bf16.xpose.msra.mxu0 0
        %857 = vmatpush.bf16.xpose.msra.mxu0 0
        %858 = vmatpush.bf16.xpose.msra.mxu0 0
        %859 = vmatpush.bf16.xpose.msra.mxu0 0
        %860 = vmatpush.bf16.xpose.msra.mxu0 %v851
        %861 = vmatmul.bf16.gmra.mxu0 %v827
        %v862 = vpop.f32.mrf.mxu0
        %v863 = vadd.f32 0.0, %v862
        %v864 = vpop.f32.mrf.mxu0
        %v865 = vadd.f32 0.0, %v864
        %866 = vmatmul.bf16.gmra.mxu0 %v830
        %v867 = vpop.f32.mrf.mxu0
        %v868 = vadd.f32 0.0, %v867
        %v869 = vpop.f32.mrf.mxu0
        %v870 = vadd.f32 0.0, %v869
        %871 = vmatmul.bf16.gmra.mxu0 %v833
        %v872 = vpop.f32.mrf.mxu0
        %v873 = vadd.f32 0.0, %v872
        %v874 = vpop.f32.mrf.mxu0
        %v875 = vadd.f32 0.0, %v874
        %876 = vmatmul.bf16.gmra.mxu0 %v836
        %v877 = vpop.f32.mrf.mxu0
        %v878 = vadd.f32 0.0, %v877
        %v879 = vpop.f32.mrf.mxu0
        %v880 = vadd.f32 0.0, %v879
        %881 = vmatmul.bf16.gmra.mxu0 %v839
        %v882 = vpop.f32.mrf.mxu0
        %v883 = vadd.f32 0.0, %v882
        %v884 = vpop.f32.mrf.mxu0
        %v885 = vadd.f32 0.0, %v884
        %886 = vmatmul.bf16.gmra.mxu0 %v842
        %v887 = vpop.f32.mrf.mxu0
        %v888 = vadd.f32 0.0, %v887
        %v889 = vpop.f32.mrf.mxu0
        %v890 = vadd.f32 0.0, %v889
        %891 = vmatmul.bf16.gmra.mxu0 %v845
        %v892 = vpop.f32.mrf.mxu0
        %v893 = vadd.f32 0.0, %v892
        %v894 = vpop.f32.mrf.mxu0
        %v895 = vadd.f32 0.0, %v894
        %896 = vmatmul.bf16.gmra.mxu0 %v848
        %v897 = vpop.f32.mrf.mxu0
        %v898 = vadd.f32 0.0, %v897
        %v899 = vpop.f32.mrf.mxu0
        %v900 = vadd.f32 0.0, %v899
        %901 = vdwg.mxu0
        %v918 = vunpack.c.l.b16 %v733
        %v919 = vunpack.c.l.b16 %v734
        %v920 = vunpack.c.l.b16 %v735
        %v921 = vunpack.c.l.b16 %v736
        %v922 = vunpack.c.l.b16 %v737
        %v923 = vunpack.c.l.b16 %v738
        %v924 = vunpack.c.l.b16 %v739
        %v925 = vunpack.c.l.b16 %v740
        %v926 = vunpack.c.l.b16 %v741
        %v927 = vunpack.c.l.b16 %v742
        %v928 = vunpack.c.l.b16 %v743
        %v929 = vunpack.c.l.b16 %v744
        %v930 = vunpack.c.l.b16 %v745
        %v931 = vunpack.c.l.b16 %v746
        %v932 = vunpack.c.l.b16 %v747
        %v933 = vunpack.c.l.b16 %v748
        %v934 = vpack.c.b16 %v919, %v918
        %v935 = vpack.c.b16 %v921, %v920
        %v936 = vpack.c.b16 %v923, %v922
        %v937 = vpack.c.b16 %v925, %v924
        %v938 = vpack.c.b16 %v927, %v926
        %v939 = vpack.c.b16 %v929, %v928
        %v940 = vpack.c.b16 %v931, %v930
        %v941 = vpack.c.b16 %v933, %v932
        %v944 = vunpack.c.l.b16 %v631
        %v945 = vunpack.c.l.b16 %v632
        %v946 = vpack.c.b16 %v945, %v944
        %v948 = vsel %vm452, %v934, 0
        %v951 = vsel %vm452, %v935, 0
        %v954 = vsel %vm452, %v936, 0
        %v957 = vsel %vm452, %v937, 0
        %v960 = vsel %vm452, %v938, 0
        %v963 = vsel %vm452, %v939, 0
        %v966 = vsel %vm452, %v940, 0
        %v969 = vsel %vm452, %v941, 0
        %v972 = vsel %vm452, %v946, 0
        %974 = vmatpush.bf16.xpose.msra.mxu0 0
        %975 = vmatpush.bf16.xpose.msra.mxu0 0
        %976 = vmatpush.bf16.xpose.msra.mxu0 0
        %977 = vmatpush.bf16.xpose.msra.mxu0 0
        %978 = vmatpush.bf16.xpose.msra.mxu0 0
        %979 = vmatpush.bf16.xpose.msra.mxu0 0
        %980 = vmatpush.bf16.xpose.msra.mxu0 0
        %981 = vmatpush.bf16.xpose.msra.mxu0 %v972
        %982 = vmatmul.bf16.gmra.mxu0 %v948
        %v983 = vpop.f32.mrf.mxu0
        %v984 = vadd.f32 0.0, %v983
        %v985 = vpop.f32.mrf.mxu0
        %v986 = vadd.f32 0.0, %v985
        %987 = vmatmul.bf16.gmra.mxu0 %v951
        %v988 = vpop.f32.mrf.mxu0
        %v989 = vadd.f32 0.0, %v988
        %v990 = vpop.f32.mrf.mxu0
        %v991 = vadd.f32 0.0, %v990
        %992 = vmatmul.bf16.gmra.mxu0 %v954
        %v993 = vpop.f32.mrf.mxu0
        %v994 = vadd.f32 0.0, %v993
        %v995 = vpop.f32.mrf.mxu0
        %v996 = vadd.f32 0.0, %v995
        %997 = vmatmul.bf16.gmra.mxu0 %v957
        %v998 = vpop.f32.mrf.mxu0
        %v999 = vadd.f32 0.0, %v998
        %v1000 = vpop.f32.mrf.mxu0
        %v1001 = vadd.f32 0.0, %v1000
        %1002 = vmatmul.bf16.gmra.mxu0 %v960
        %v1003 = vpop.f32.mrf.mxu0
        %v1004 = vadd.f32 0.0, %v1003
        %v1005 = vpop.f32.mrf.mxu0
        %v1006 = vadd.f32 0.0, %v1005
        %1007 = vmatmul.bf16.gmra.mxu0 %v963
        %v1008 = vpop.f32.mrf.mxu0
        %v1009 = vadd.f32 0.0, %v1008
        %v1010 = vpop.f32.mrf.mxu0
        %v1011 = vadd.f32 0.0, %v1010
        %1012 = vmatmul.bf16.gmra.mxu0 %v966
        %v1013 = vpop.f32.mrf.mxu0
        %v1014 = vadd.f32 0.0, %v1013
        %v1015 = vpop.f32.mrf.mxu0
        %v1016 = vadd.f32 0.0, %v1015
        %1017 = vmatmul.bf16.gmra.mxu0 %v969
        %v1018 = vpop.f32.mrf.mxu0
        %v1019 = vadd.f32 0.0, %v1018
        %v1020 = vpop.f32.mrf.mxu0
        %v1021 = vadd.f32 0.0, %v1020
        %1022 = vdwg.mxu0
        %v1039 = vunpack.c.l.b16 %v749
        %v1040 = vunpack.c.l.b16 %v750
        %v1041 = vunpack.c.l.b16 %v751
        %v1042 = vunpack.c.l.b16 %v752
        %v1043 = vunpack.c.l.b16 %v753
        %v1044 = vunpack.c.l.b16 %v754
        %v1045 = vunpack.c.l.b16 %v755
        %v1046 = vunpack.c.l.b16 %v756
        %v1047 = vunpack.c.l.b16 %v757
        %v1048 = vunpack.c.l.b16 %v758
        %v1049 = vunpack.c.l.b16 %v759
        %v1050 = vunpack.c.l.b16 %v760
        %v1051 = vunpack.c.l.b16 %v761
        %v1052 = vunpack.c.l.b16 %v762
        %v1053 = vunpack.c.l.b16 %v763
        %v1054 = vunpack.c.l.b16 %v764
        %v1055 = vpack.c.b16 %v1040, %v1039
        %v1056 = vpack.c.b16 %v1042, %v1041
        %v1057 = vpack.c.b16 %v1044, %v1043
        %v1058 = vpack.c.b16 %v1046, %v1045
        %v1059 = vpack.c.b16 %v1048, %v1047
        %v1060 = vpack.c.b16 %v1050, %v1049
        %v1061 = vpack.c.b16 %v1052, %v1051
        %v1062 = vpack.c.b16 %v1054, %v1053
        %v1065 = vunpack.c.l.b16 %v633
        %v1066 = vunpack.c.l.b16 %v634
        %v1067 = vpack.c.b16 %v1066, %v1065
        %v1069 = vsel %vm452, %v1055, 0
        %v1072 = vsel %vm452, %v1056, 0
        %v1075 = vsel %vm452, %v1057, 0
        %v1078 = vsel %vm452, %v1058, 0
        %v1081 = vsel %vm452, %v1059, 0
        %v1084 = vsel %vm452, %v1060, 0
        %v1087 = vsel %vm452, %v1061, 0
        %v1090 = vsel %vm452, %v1062, 0
        %v1093 = vsel %vm452, %v1067, 0
        %1095 = vmatpush.bf16.xpose.msra.mxu0 0
        %1096 = vmatpush.bf16.xpose.msra.mxu0 0
        %1097 = vmatpush.bf16.xpose.msra.mxu0 0
        %1098 = vmatpush.bf16.xpose.msra.mxu0 0
        %1099 = vmatpush.bf16.xpose.msra.mxu0 0
        %1100 = vmatpush.bf16.xpose.msra.mxu0 0
        %1101 = vmatpush.bf16.xpose.msra.mxu0 0
        %1102 = vmatpush.bf16.xpose.msra.mxu0 %v1093
        %1103 = vmatmul.bf16.gmra.mxu0 %v1069
        %v1104 = vpop.f32.mrf.mxu0
        %v1105 = vadd.f32 0.0, %v1104
        %v1106 = vpop.f32.mrf.mxu0
        %v1107 = vadd.f32 0.0, %v1106
        %1108 = vmatmul.bf16.gmra.mxu0 %v1072
        %v1109 = vpop.f32.mrf.mxu0
        %v1110 = vadd.f32 0.0, %v1109
        %v1111 = vpop.f32.mrf.mxu0
        %v1112 = vadd.f32 0.0, %v1111
        %1113 = vmatmul.bf16.gmra.mxu0 %v1075
        %v1114 = vpop.f32.mrf.mxu0
        %v1115 = vadd.f32 0.0, %v1114
        %v1116 = vpop.f32.mrf.mxu0
        %v1117 = vadd.f32 0.0, %v1116
        %1118 = vmatmul.bf16.gmra.mxu0 %v1078
        %v1119 = vpop.f32.mrf.mxu0
        %v1120 = vadd.f32 0.0, %v1119
        %v1121 = vpop.f32.mrf.mxu0
        %v1122 = vadd.f32 0.0, %v1121
        %1123 = vmatmul.bf16.gmra.mxu0 %v1081
        %v1124 = vpop.f32.mrf.mxu0
        %v1125 = vadd.f32 0.0, %v1124
        %v1126 = vpop.f32.mrf.mxu0
        %v1127 = vadd.f32 0.0, %v1126
        %1128 = vmatmul.bf16.gmra.mxu0 %v1084
        %v1129 = vpop.f32.mrf.mxu0
        %v1130 = vadd.f32 0.0, %v1129
        %v1131 = vpop.f32.mrf.mxu0
        %v1132 = vadd.f32 0.0, %v1131
        %1133 = vmatmul.bf16.gmra.mxu0 %v1087
        %v1134 = vpop.f32.mrf.mxu0
        %v1135 = vadd.f32 0.0, %v1134
        %v1136 = vpop.f32.mrf.mxu0
        %v1137 = vadd.f32 0.0, %v1136
        %1138 = vmatmul.bf16.gmra.mxu0 %v1090
        %v1139 = vpop.f32.mrf.mxu0
        %v1140 = vadd.f32 0.0, %v1139
        %v1141 = vpop.f32.mrf.mxu0
        %v1142 = vadd.f32 0.0, %v1141
        %1143 = vdwg.mxu0
        %v1160 = vunpack.c.l.b16 %v765
        %v1161 = vunpack.c.l.b16 %v766
        %v1162 = vunpack.c.l.b16 %v767
        %v1163 = vunpack.c.l.b16 %v768
        %v1164 = vunpack.c.l.b16 %v769
        %v1165 = vunpack.c.l.b16 %v770
        %v1166 = vunpack.c.l.b16 %v771
        %v1167 = vunpack.c.l.b16 %v772
        %v1168 = vunpack.c.l.b16 %v773
        %v1169 = vunpack.c.l.b16 %v774
        %v1170 = vunpack.c.l.b16 %v775
        %v1171 = vunpack.c.l.b16 %v776
        %v1172 = vunpack.c.l.b16 %v777
        %v1173 = vunpack.c.l.b16 %v778
        %v1174 = vunpack.c.l.b16 %v779
        %v1175 = vunpack.c.l.b16 %v780
        %v1176 = vpack.c.b16 %v1161, %v1160
        %v1177 = vpack.c.b16 %v1163, %v1162
        %v1178 = vpack.c.b16 %v1165, %v1164
        %v1179 = vpack.c.b16 %v1167, %v1166
        %v1180 = vpack.c.b16 %v1169, %v1168
        %v1181 = vpack.c.b16 %v1171, %v1170
        %v1182 = vpack.c.b16 %v1173, %v1172
        %v1183 = vpack.c.b16 %v1175, %v1174
        %v1186 = vunpack.c.l.b16 %v635
        %v1187 = vunpack.c.l.b16 %v636
        %v1188 = vpack.c.b16 %v1187, %v1186
        %v1190 = vsel %vm452, %v1176, 0
        %v1193 = vsel %vm452, %v1177, 0
        %v1196 = vsel %vm452, %v1178, 0
        %v1199 = vsel %vm452, %v1179, 0
        %v1202 = vsel %vm452, %v1180, 0
        %v1205 = vsel %vm452, %v1181, 0
        %v1208 = vsel %vm452, %v1182, 0
        %v1211 = vsel %vm452, %v1183, 0
        %v1214 = vsel %vm452, %v1188, 0
        %1216 = vmatpush.bf16.xpose.msra.mxu0 0
        %1217 = vmatpush.bf16.xpose.msra.mxu0 0
        %1218 = vmatpush.bf16.xpose.msra.mxu0 0
        %1219 = vmatpush.bf16.xpose.msra.mxu0 0
        %1220 = vmatpush.bf16.xpose.msra.mxu0 0
        %1221 = vmatpush.bf16.xpose.msra.mxu0 0
        %1222 = vmatpush.bf16.xpose.msra.mxu0 0
        %1223 = vmatpush.bf16.xpose.msra.mxu0 %v1214
        %1224 = vmatmul.bf16.gmra.mxu0 %v1190
        %v1225 = vpop.f32.mrf.mxu0
        %v1226 = vadd.f32 0.0, %v1225
        %v1227 = vpop.f32.mrf.mxu0
        %v1228 = vadd.f32 0.0, %v1227
        %1229 = vmatmul.bf16.gmra.mxu0 %v1193
        %v1230 = vpop.f32.mrf.mxu0
        %v1231 = vadd.f32 0.0, %v1230
        %v1232 = vpop.f32.mrf.mxu0
        %v1233 = vadd.f32 0.0, %v1232
        %1234 = vmatmul.bf16.gmra.mxu0 %v1196
        %v1235 = vpop.f32.mrf.mxu0
        %v1236 = vadd.f32 0.0, %v1235
        %v1237 = vpop.f32.mrf.mxu0
        %v1238 = vadd.f32 0.0, %v1237
        %1239 = vmatmul.bf16.gmra.mxu0 %v1199
        %v1240 = vpop.f32.mrf.mxu0
        %v1241 = vadd.f32 0.0, %v1240
        %v1242 = vpop.f32.mrf.mxu0
        %v1243 = vadd.f32 0.0, %v1242
        %1244 = vmatmul.bf16.gmra.mxu0 %v1202
        %v1245 = vpop.f32.mrf.mxu0
        %v1246 = vadd.f32 0.0, %v1245
        %v1247 = vpop.f32.mrf.mxu0
        %v1248 = vadd.f32 0.0, %v1247
        %1249 = vmatmul.bf16.gmra.mxu0 %v1205
        %v1250 = vpop.f32.mrf.mxu0
        %v1251 = vadd.f32 0.0, %v1250
        %v1252 = vpop.f32.mrf.mxu0
        %v1253 = vadd.f32 0.0, %v1252
        %1254 = vmatmul.bf16.gmra.mxu0 %v1208
        %v1255 = vpop.f32.mrf.mxu0
        %v1256 = vadd.f32 0.0, %v1255
        %v1257 = vpop.f32.mrf.mxu0
        %v1258 = vadd.f32 0.0, %v1257
        %1259 = vmatmul.bf16.gmra.mxu0 %v1211
        %v1260 = vpop.f32.mrf.mxu0
        %v1261 = vadd.f32 0.0, %v1260
        %v1262 = vpop.f32.mrf.mxu0
        %v1263 = vadd.f32 0.0, %v1262
        %1264 = vdwg.mxu0
        %v1265 = vmul.f32 %v863, 0.5
        %v1266 = vmul.f32 %v865, 0.5
        %v1267 = vmul.f32 %v868, 0.5
        %v1268 = vmul.f32 %v870, 0.5
        %v1269 = vmul.f32 %v873, 0.5
        %v1270 = vmul.f32 %v875, 0.5
        %v1271 = vmul.f32 %v878, 0.5
        %v1272 = vmul.f32 %v880, 0.5
        %v1273 = vmul.f32 %v883, 0.5
        %v1274 = vmul.f32 %v885, 0.5
        %v1275 = vmul.f32 %v888, 0.5
        %v1276 = vmul.f32 %v890, 0.5
        %v1277 = vmul.f32 %v893, 0.5
        %v1278 = vmul.f32 %v895, 0.5
        %v1279 = vmul.f32 %v898, 0.5
        %v1280 = vmul.f32 %v900, 0.5
        %v1281 = vmul.f32 %v984, 0.5
        %v1282 = vmul.f32 %v986, 0.5
        %v1283 = vmul.f32 %v989, 0.5
        %v1284 = vmul.f32 %v991, 0.5
        %v1285 = vmul.f32 %v994, 0.5
        %v1286 = vmul.f32 %v996, 0.5
        %v1287 = vmul.f32 %v999, 0.5
        %v1288 = vmul.f32 %v1001, 0.5
        %v1289 = vmul.f32 %v1004, 0.5
        %v1290 = vmul.f32 %v1006, 0.5
        %v1291 = vmul.f32 %v1009, 0.5
        %v1292 = vmul.f32 %v1011, 0.5
        %v1293 = vmul.f32 %v1014, 0.5
        %v1294 = vmul.f32 %v1016, 0.5
        %v1295 = vmul.f32 %v1019, 0.5
        %v1296 = vmul.f32 %v1021, 0.5
        %v1297 = vmul.f32 %v1105, 0.5
        %v1298 = vmul.f32 %v1107, 0.5
        %v1299 = vmul.f32 %v1110, 0.5
        %v1300 = vmul.f32 %v1112, 0.5
        %v1301 = vmul.f32 %v1115, 0.5
        %v1302 = vmul.f32 %v1117, 0.5
        %v1303 = vmul.f32 %v1120, 0.5
        %v1304 = vmul.f32 %v1122, 0.5
        %v1305 = vmul.f32 %v1125, 0.5
        %v1306 = vmul.f32 %v1127, 0.5
        %v1307 = vmul.f32 %v1130, 0.5
        %v1308 = vmul.f32 %v1132, 0.5
        %v1309 = vmul.f32 %v1135, 0.5
        %v1310 = vmul.f32 %v1137, 0.5
        %v1311 = vmul.f32 %v1140, 0.5
        %v1312 = vmul.f32 %v1142, 0.5
        %v1313 = vmul.f32 %v1226, 0.5
        %v1314 = vmul.f32 %v1228, 0.5
        %v1315 = vmul.f32 %v1231, 0.5
        %v1316 = vmul.f32 %v1233, 0.5
        %v1317 = vmul.f32 %v1236, 0.5
        %v1318 = vmul.f32 %v1238, 0.5
        %v1319 = vmul.f32 %v1241, 0.5
        %v1320 = vmul.f32 %v1243, 0.5
        %v1321 = vmul.f32 %v1246, 0.5
        %v1322 = vmul.f32 %v1248, 0.5
        %v1323 = vmul.f32 %v1251, 0.5
        %v1324 = vmul.f32 %v1253, 0.5
        %v1325 = vmul.f32 %v1256, 0.5
        %v1326 = vmul.f32 %v1258, 0.5
        %v1327 = vmul.f32 %v1261, 0.5
        %v1328 = vmul.f32 %v1263, 0.5
        %vm1329 = vcmask 130048
        %v1330 = vsel %vm1329, %v1265, -inf
        %1331 = vmax.xlane.f32.xlu0 %v1330
        %v1332 = vpop.xlane.xlu0 %1331
        %v1333 = vsel %vm1329, %v1266, -inf
        %1334 = vmax.xlane.f32.xlu0 %v1333
        %v1335 = vpop.xlane.xlu0 %1334
        %v1336 = vsel %vm1329, %v1267, -inf
        %1337 = vmax.xlane.f32.xlu0 %v1336
        %v1338 = vpop.xlane.xlu0 %1337
        %v1339 = vsel %vm1329, %v1268, -inf
        %1340 = vmax.xlane.f32.xlu0 %v1339
        %v1341 = vpop.xlane.xlu0 %1340
        %v1342 = vsel %vm1329, %v1269, -inf
        %1343 = vmax.xlane.f32.xlu0 %v1342
        %v1344 = vpop.xlane.xlu0 %1343
        %v1345 = vsel %vm1329, %v1270, -inf
        %1346 = vmax.xlane.f32.xlu0 %v1345
        %v1347 = vpop.xlane.xlu0 %1346
        %v1348 = vsel %vm1329, %v1271, -inf
        %1349 = vmax.xlane.f32.xlu0 %v1348
        %v1350 = vpop.xlane.xlu0 %1349
        %v1351 = vsel %vm1329, %v1272, -inf
        %1352 = vmax.xlane.f32.xlu0 %v1351
        %v1353 = vpop.xlane.xlu0 %1352
        %v1354 = vsel %vm1329, %v1273, -inf
        %1355 = vmax.xlane.f32.xlu0 %v1354
        %v1356 = vpop.xlane.xlu0 %1355
        %v1357 = vsel %vm1329, %v1274, -inf
        %1358 = vmax.xlane.f32.xlu0 %v1357
        %v1359 = vpop.xlane.xlu0 %1358
        %v1360 = vsel %vm1329, %v1275, -inf
        %1361 = vmax.xlane.f32.xlu0 %v1360
        %v1362 = vpop.xlane.xlu0 %1361
        %v1363 = vsel %vm1329, %v1276, -inf
        %1364 = vmax.xlane.f32.xlu0 %v1363
        %v1365 = vpop.xlane.xlu0 %1364
        %v1366 = vsel %vm1329, %v1277, -inf
        %1367 = vmax.xlane.f32.xlu0 %v1366
        %v1368 = vpop.xlane.xlu0 %1367
        %v1369 = vsel %vm1329, %v1278, -inf
        %1370 = vmax.xlane.f32.xlu0 %v1369
        %v1371 = vpop.xlane.xlu0 %1370
        %v1372 = vsel %vm1329, %v1279, -inf
        %1373 = vmax.xlane.f32.xlu0 %v1372
        %v1374 = vpop.xlane.xlu0 %1373
        %v1375 = vsel %vm1329, %v1280, -inf
        %1376 = vmax.xlane.f32.xlu0 %v1375
        %v1377 = vpop.xlane.xlu0 %1376
        %v1378 = vsel %vm1329, %v1281, -inf
        %1379 = vmax.xlane.f32.xlu0 %v1378
        %v1380 = vpop.xlane.xlu0 %1379
        %v1381 = vsel %vm1329, %v1282, -inf
        %1382 = vmax.xlane.f32.xlu0 %v1381
        %v1383 = vpop.xlane.xlu0 %1382
        %v1384 = vsel %vm1329, %v1283, -inf
        %1385 = vmax.xlane.f32.xlu0 %v1384
        %v1386 = vpop.xlane.xlu0 %1385
        %v1387 = vsel %vm1329, %v1284, -inf
        %1388 = vmax.xlane.f32.xlu0 %v1387
        %v1389 = vpop.xlane.xlu0 %1388
        %v1390 = vsel %vm1329, %v1285, -inf
        %1391 = vmax.xlane.f32.xlu0 %v1390
        %v1392 = vpop.xlane.xlu0 %1391
        %v1393 = vsel %vm1329, %v1286, -inf
        %1394 = vmax.xlane.f32.xlu0 %v1393
        %v1395 = vpop.xlane.xlu0 %1394
        %v1396 = vsel %vm1329, %v1287, -inf
        %1397 = vmax.xlane.f32.xlu0 %v1396
        %v1398 = vpop.xlane.xlu0 %1397
        %v1399 = vsel %vm1329, %v1288, -inf
        %1400 = vmax.xlane.f32.xlu0 %v1399
        %v1401 = vpop.xlane.xlu0 %1400
        %v1402 = vsel %vm1329, %v1289, -inf
        %1403 = vmax.xlane.f32.xlu0 %v1402
        %v1404 = vpop.xlane.xlu0 %1403
        %v1405 = vsel %vm1329, %v1290, -inf
        %1406 = vmax.xlane.f32.xlu0 %v1405
        %v1407 = vpop.xlane.xlu0 %1406
        %v1408 = vsel %vm1329, %v1291, -inf
        %1409 = vmax.xlane.f32.xlu0 %v1408
        %v1410 = vpop.xlane.xlu0 %1409
        %v1411 = vsel %vm1329, %v1292, -inf
        %1412 = vmax.xlane.f32.xlu0 %v1411
        %v1413 = vpop.xlane.xlu0 %1412
        %v1414 = vsel %vm1329, %v1293, -inf
        %1415 = vmax.xlane.f32.xlu0 %v1414
        %v1416 = vpop.xlane.xlu0 %1415
        %v1417 = vsel %vm1329, %v1294, -inf
        %1418 = vmax.xlane.f32.xlu0 %v1417
        %v1419 = vpop.xlane.xlu0 %1418
        %v1420 = vsel %vm1329, %v1295, -inf
        %1421 = vmax.xlane.f32.xlu0 %v1420
        %v1422 = vpop.xlane.xlu0 %1421
        %v1423 = vsel %vm1329, %v1296, -inf
        %1424 = vmax.xlane.f32.xlu0 %v1423
        %v1425 = vpop.xlane.xlu0 %1424
        %v1426 = vsel %vm1329, %v1297, -inf
        %1427 = vmax.xlane.f32.xlu0 %v1426
        %v1428 = vpop.xlane.xlu0 %1427
        %v1429 = vsel %vm1329, %v1298, -inf
        %1430 = vmax.xlane.f32.xlu0 %v1429
        %v1431 = vpop.xlane.xlu0 %1430
        %v1432 = vsel %vm1329, %v1299, -inf
        %1433 = vmax.xlane.f32.xlu0 %v1432
        %v1434 = vpop.xlane.xlu0 %1433
        %v1435 = vsel %vm1329, %v1300, -inf
        %1436 = vmax.xlane.f32.xlu0 %v1435
        %v1437 = vpop.xlane.xlu0 %1436
        %v1438 = vsel %vm1329, %v1301, -inf
        %1439 = vmax.xlane.f32.xlu0 %v1438
        %v1440 = vpop.xlane.xlu0 %1439
        %v1441 = vsel %vm1329, %v1302, -inf
        %1442 = vmax.xlane.f32.xlu0 %v1441
        %v1443 = vpop.xlane.xlu0 %1442
        %v1444 = vsel %vm1329, %v1303, -inf
        %1445 = vmax.xlane.f32.xlu0 %v1444
        %v1446 = vpop.xlane.xlu0 %1445
        %v1447 = vsel %vm1329, %v1304, -inf
        %1448 = vmax.xlane.f32.xlu0 %v1447
        %v1449 = vpop.xlane.xlu0 %1448
        %v1450 = vsel %vm1329, %v1305, -inf
        %1451 = vmax.xlane.f32.xlu0 %v1450
        %v1452 = vpop.xlane.xlu0 %1451
        %v1453 = vsel %vm1329, %v1306, -inf
        %1454 = vmax.xlane.f32.xlu0 %v1453
        %v1455 = vpop.xlane.xlu0 %1454
        %v1456 = vsel %vm1329, %v1307, -inf
        %1457 = vmax.xlane.f32.xlu0 %v1456
        %v1458 = vpop.xlane.xlu0 %1457
        %v1459 = vsel %vm1329, %v1308, -inf
        %1460 = vmax.xlane.f32.xlu0 %v1459
        %v1461 = vpop.xlane.xlu0 %1460
        %v1462 = vsel %vm1329, %v1309, -inf
        %1463 = vmax.xlane.f32.xlu0 %v1462
        %v1464 = vpop.xlane.xlu0 %1463
        %v1465 = vsel %vm1329, %v1310, -inf
        %1466 = vmax.xlane.f32.xlu0 %v1465
        %v1467 = vpop.xlane.xlu0 %1466
        %v1468 = vsel %vm1329, %v1311, -inf
        %1469 = vmax.xlane.f32.xlu0 %v1468
        %v1470 = vpop.xlane.xlu0 %1469
        %v1471 = vsel %vm1329, %v1312, -inf
        %1472 = vmax.xlane.f32.xlu0 %v1471
        %v1473 = vpop.xlane.xlu0 %1472
        %v1474 = vsel %vm1329, %v1313, -inf
        %1475 = vmax.xlane.f32.xlu0 %v1474
        %v1476 = vpop.xlane.xlu0 %1475
        %v1477 = vsel %vm1329, %v1314, -inf
        %1478 = vmax.xlane.f32.xlu0 %v1477
        %v1479 = vpop.xlane.xlu0 %1478
        %v1480 = vsel %vm1329, %v1315, -inf
        %1481 = vmax.xlane.f32.xlu0 %v1480
        %v1482 = vpop.xlane.xlu0 %1481
        %v1483 = vsel %vm1329, %v1316, -inf
        %1484 = vmax.xlane.f32.xlu0 %v1483
        %v1485 = vpop.xlane.xlu0 %1484
        %v1486 = vsel %vm1329, %v1317, -inf
        %1487 = vmax.xlane.f32.xlu0 %v1486
        %v1488 = vpop.xlane.xlu0 %1487
        %v1489 = vsel %vm1329, %v1318, -inf
        %1490 = vmax.xlane.f32.xlu0 %v1489
        %v1491 = vpop.xlane.xlu0 %1490
        %v1492 = vsel %vm1329, %v1319, -inf
        %1493 = vmax.xlane.f32.xlu0 %v1492
        %v1494 = vpop.xlane.xlu0 %1493
        %v1495 = vsel %vm1329, %v1320, -inf
        %1496 = vmax.xlane.f32.xlu0 %v1495
        %v1497 = vpop.xlane.xlu0 %1496
        %v1498 = vsel %vm1329, %v1321, -inf
        %1499 = vmax.xlane.f32.xlu0 %v1498
        %v1500 = vpop.xlane.xlu0 %1499
        %v1501 = vsel %vm1329, %v1322, -inf
        %1502 = vmax.xlane.f32.xlu0 %v1501
        %v1503 = vpop.xlane.xlu0 %1502
        %v1504 = vsel %vm1329, %v1323, -inf
        %1505 = vmax.xlane.f32.xlu0 %v1504
        %v1506 = vpop.xlane.xlu0 %1505
        %v1507 = vsel %vm1329, %v1324, -inf
        %1508 = vmax.xlane.f32.xlu0 %v1507
        %v1509 = vpop.xlane.xlu0 %1508
        %v1510 = vsel %vm1329, %v1325, -inf
        %1511 = vmax.xlane.f32.xlu0 %v1510
        %v1512 = vpop.xlane.xlu0 %1511
        %v1513 = vsel %vm1329, %v1326, -inf
        %1514 = vmax.xlane.f32.xlu0 %v1513
        %v1515 = vpop.xlane.xlu0 %1514
        %v1516 = vsel %vm1329, %v1327, -inf
        %1517 = vmax.xlane.f32.xlu0 %v1516
        %v1518 = vpop.xlane.xlu0 %1517
        %v1519 = vsel %vm1329, %v1328, -inf
        %1520 = vmax.xlane.f32.xlu0 %v1519
        %v1521 = vpop.xlane.xlu0 %1520
        %v1522 = vsub.f32 %v1265, %v1332
        %v1523 = vsub.f32 %v1266, %v1335
        %v1524 = vsub.f32 %v1267, %v1338
        %v1525 = vsub.f32 %v1268, %v1341
        %v1526 = vsub.f32 %v1269, %v1344
        %v1527 = vsub.f32 %v1270, %v1347
        %v1528 = vsub.f32 %v1271, %v1350
        %v1529 = vsub.f32 %v1272, %v1353
        %v1530 = vsub.f32 %v1273, %v1356
        %v1531 = vsub.f32 %v1274, %v1359
        %v1532 = vsub.f32 %v1275, %v1362
        %v1533 = vsub.f32 %v1276, %v1365
        %v1534 = vsub.f32 %v1277, %v1368
        %v1535 = vsub.f32 %v1278, %v1371
        %v1536 = vsub.f32 %v1279, %v1374
        %v1537 = vsub.f32 %v1280, %v1377
        %v1538 = vsub.f32 %v1281, %v1380
        %v1539 = vsub.f32 %v1282, %v1383
        %v1540 = vsub.f32 %v1283, %v1386
        %v1541 = vsub.f32 %v1284, %v1389
        %v1542 = vsub.f32 %v1285, %v1392
        %v1543 = vsub.f32 %v1286, %v1395
        %v1544 = vsub.f32 %v1287, %v1398
        %v1545 = vsub.f32 %v1288, %v1401
        %v1546 = vsub.f32 %v1289, %v1404
        %v1547 = vsub.f32 %v1290, %v1407
        %v1548 = vsub.f32 %v1291, %v1410
        %v1549 = vsub.f32 %v1292, %v1413
        %v1550 = vsub.f32 %v1293, %v1416
        %v1551 = vsub.f32 %v1294, %v1419
        %v1552 = vsub.f32 %v1295, %v1422
        %v1553 = vsub.f32 %v1296, %v1425
        %v1554 = vsub.f32 %v1297, %v1428
        %v1555 = vsub.f32 %v1298, %v1431
        %v1556 = vsub.f32 %v1299, %v1434
        %v1557 = vsub.f32 %v1300, %v1437
        %v1558 = vsub.f32 %v1301, %v1440
        %v1559 = vsub.f32 %v1302, %v1443
        %v1560 = vsub.f32 %v1303, %v1446
        %v1561 = vsub.f32 %v1304, %v1449
        %v1562 = vsub.f32 %v1305, %v1452
        %v1563 = vsub.f32 %v1306, %v1455
        %v1564 = vsub.f32 %v1307, %v1458
        %v1565 = vsub.f32 %v1308, %v1461
        %v1566 = vsub.f32 %v1309, %v1464
        %v1567 = vsub.f32 %v1310, %v1467
        %v1568 = vsub.f32 %v1311, %v1470
        %v1569 = vsub.f32 %v1312, %v1473
        %v1570 = vsub.f32 %v1313, %v1476
        %v1571 = vsub.f32 %v1314, %v1479
        %v1572 = vsub.f32 %v1315, %v1482
        %v1573 = vsub.f32 %v1316, %v1485
        %v1574 = vsub.f32 %v1317, %v1488
        %v1575 = vsub.f32 %v1318, %v1491
        %v1576 = vsub.f32 %v1319, %v1494
        %v1577 = vsub.f32 %v1320, %v1497
        %v1578 = vsub.f32 %v1321, %v1500
        %v1579 = vsub.f32 %v1322, %v1503
        %v1580 = vsub.f32 %v1323, %v1506
        %v1581 = vsub.f32 %v1324, %v1509
        %v1582 = vsub.f32 %v1325, %v1512
        %v1583 = vsub.f32 %v1326, %v1515
        %v1584 = vsub.f32 %v1327, %v1518
        %v1585 = vsub.f32 %v1328, %v1521
        %v1586 = vmul.f32 %v1522, 1.442695
        %v1587 = vpow.pop %v1586
        %v1588 = vmul.f32 %v1523, 1.442695
        %v1589 = vpow.pop %v1588
        %v1590 = vmul.f32 %v1524, 1.442695
        %v1591 = vpow.pop %v1590
        %v1592 = vmul.f32 %v1525, 1.442695
        %v1593 = vpow.pop %v1592
        %v1594 = vmul.f32 %v1526, 1.442695
        %v1595 = vpow.pop %v1594
        %v1596 = vmul.f32 %v1527, 1.442695
        %v1597 = vpow.pop %v1596
        %v1598 = vmul.f32 %v1528, 1.442695
        %v1599 = vpow.pop %v1598
        %v1600 = vmul.f32 %v1529, 1.442695
        %v1601 = vpow.pop %v1600
        %v1602 = vmul.f32 %v1530, 1.442695
        %v1603 = vpow.pop %v1602
        %v1604 = vmul.f32 %v1531, 1.442695
        %v1605 = vpow.pop %v1604
        %v1606 = vmul.f32 %v1532, 1.442695
        %v1607 = vpow.pop %v1606
        %v1608 = vmul.f32 %v1533, 1.442695
        %v1609 = vpow.pop %v1608
        %v1610 = vmul.f32 %v1534, 1.442695
        %v1611 = vpow.pop %v1610
        %v1612 = vmul.f32 %v1535, 1.442695
        %v1613 = vpow.pop %v1612
        %v1614 = vmul.f32 %v1536, 1.442695
        %v1615 = vpow.pop %v1614
        %v1616 = vmul.f32 %v1537, 1.442695
        %v1617 = vpow.pop %v1616
        %v1618 = vmul.f32 %v1538, 1.442695
        %v1619 = vpow.pop %v1618
        %v1620 = vmul.f32 %v1539, 1.442695
        %v1621 = vpow.pop %v1620
        %v1622 = vmul.f32 %v1540, 1.442695
        %v1623 = vpow.pop %v1622
        %v1624 = vmul.f32 %v1541, 1.442695
        %v1625 = vpow.pop %v1624
        %v1626 = vmul.f32 %v1542, 1.442695
        %v1627 = vpow.pop %v1626
        %v1628 = vmul.f32 %v1543, 1.442695
        %v1629 = vpow.pop %v1628
        %v1630 = vmul.f32 %v1544, 1.442695
        %v1631 = vpow.pop %v1630
        %v1632 = vmul.f32 %v1545, 1.442695
        %v1633 = vpow.pop %v1632
        %v1634 = vmul.f32 %v1546, 1.442695
        %v1635 = vpow.pop %v1634
        %v1636 = vmul.f32 %v1547, 1.442695
        %v1637 = vpow.pop %v1636
        %v1638 = vmul.f32 %v1548, 1.442695
        %v1639 = vpow.pop %v1638
        %v1640 = vmul.f32 %v1549, 1.442695
        %v1641 = vpow.pop %v1640
        %v1642 = vmul.f32 %v1550, 1.442695
        %v1643 = vpow.pop %v1642
        %v1644 = vmul.f32 %v1551, 1.442695
        %v1645 = vpow.pop %v1644
        %v1646 = vmul.f32 %v1552, 1.442695
        %v1647 = vpow.pop %v1646
        %v1648 = vmul.f32 %v1553, 1.442695
        %v1649 = vpow.pop %v1648
        %v1650 = vmul.f32 %v1554, 1.442695
        %v1651 = vpow.pop %v1650
        %v1652 = vmul.f32 %v1555, 1.442695
        %v1653 = vpow.pop %v1652
        %v1654 = vmul.f32 %v1556, 1.442695
        %v1655 = vpow.pop %v1654
        %v1656 = vmul.f32 %v1557, 1.442695
        %v1657 = vpow.pop %v1656
        %v1658 = vmul.f32 %v1558, 1.442695
        %v1659 = vpow.pop %v1658
        %v1660 = vmul.f32 %v1559, 1.442695
        %v1661 = vpow.pop %v1660
        %v1662 = vmul.f32 %v1560, 1.442695
        %v1663 = vpow.pop %v1662
        %v1664 = vmul.f32 %v1561, 1.442695
        %v1665 = vpow.pop %v1664
        %v1666 = vmul.f32 %v1562, 1.442695
        %v1667 = vpow.pop %v1666
        %v1668 = vmul.f32 %v1563, 1.442695
        %v1669 = vpow.pop %v1668
        %v1670 = vmul.f32 %v1564, 1.442695
        %v1671 = vpow.pop %v1670
        %v1672 = vmul.f32 %v1565, 1.442695
        %v1673 = vpow.pop %v1672
        %v1674 = vmul.f32 %v1566, 1.442695
        %v1675 = vpow.pop %v1674
        %v1676 = vmul.f32 %v1567, 1.442695
        %v1677 = vpow.pop %v1676
        %v1678 = vmul.f32 %v1568, 1.442695
        %v1679 = vpow.pop %v1678
        %v1680 = vmul.f32 %v1569, 1.442695
        %v1681 = vpow.pop %v1680
        %v1682 = vmul.f32 %v1570, 1.442695
        %v1683 = vpow.pop %v1682
        %v1684 = vmul.f32 %v1571, 1.442695
        %v1685 = vpow.pop %v1684
        %v1686 = vmul.f32 %v1572, 1.442695
        %v1687 = vpow.pop %v1686
        %v1688 = vmul.f32 %v1573, 1.442695
        %v1689 = vpow.pop %v1688
        %v1690 = vmul.f32 %v1574, 1.442695
        %v1691 = vpow.pop %v1690
        %v1692 = vmul.f32 %v1575, 1.442695
        %v1693 = vpow.pop %v1692
        %v1694 = vmul.f32 %v1576, 1.442695
        %v1695 = vpow.pop %v1694
        %v1696 = vmul.f32 %v1577, 1.442695
        %v1697 = vpow.pop %v1696
        %v1698 = vmul.f32 %v1578, 1.442695
        %v1699 = vpow.pop %v1698
        %v1700 = vmul.f32 %v1579, 1.442695
        %v1701 = vpow.pop %v1700
        %v1702 = vmul.f32 %v1580, 1.442695
        %v1703 = vpow.pop %v1702
        %v1704 = vmul.f32 %v1581, 1.442695
        %v1705 = vpow.pop %v1704
        %v1706 = vmul.f32 %v1582, 1.442695
        %v1707 = vpow.pop %v1706
        %v1708 = vmul.f32 %v1583, 1.442695
        %v1709 = vpow.pop %v1708
        %v1710 = vmul.f32 %v1584, 1.442695
        %v1711 = vpow.pop %v1710
        %v1712 = vmul.f32 %v1585, 1.442695
        %v1713 = vpow.pop %v1712
        %v1714 = vsel %vm1329, %v1587, 0.0
        %1715 = vadd.xlane.f32.xlu0 %v1714
        %v1716 = vpop.xlane.xlu0 %1715
        %v1717 = vsel %vm1329, %v1589, 0.0
        %1718 = vadd.xlane.f32.xlu0 %v1717
        %v1719 = vpop.xlane.xlu0 %1718
        %v1720 = vsel %vm1329, %v1591, 0.0
        %1721 = vadd.xlane.f32.xlu0 %v1720
        %v1722 = vpop.xlane.xlu0 %1721
        %v1723 = vsel %vm1329, %v1593, 0.0
        %1724 = vadd.xlane.f32.xlu0 %v1723
        %v1725 = vpop.xlane.xlu0 %1724
        %v1726 = vsel %vm1329, %v1595, 0.0
        %1727 = vadd.xlane.f32.xlu0 %v1726
        %v1728 = vpop.xlane.xlu0 %1727
        %v1729 = vsel %vm1329, %v1597, 0.0
        %1730 = vadd.xlane.f32.xlu0 %v1729
        %v1731 = vpop.xlane.xlu0 %1730
        %v1732 = vsel %vm1329, %v1599, 0.0
        %1733 = vadd.xlane.f32.xlu0 %v1732
        %v1734 = vpop.xlane.xlu0 %1733
        %v1735 = vsel %vm1329, %v1601, 0.0
        %1736 = vadd.xlane.f32.xlu0 %v1735
        %v1737 = vpop.xlane.xlu0 %1736
        %v1738 = vsel %vm1329, %v1603, 0.0
        %1739 = vadd.xlane.f32.xlu0 %v1738
        %v1740 = vpop.xlane.xlu0 %1739
        %v1741 = vsel %vm1329, %v1605, 0.0
        %1742 = vadd.xlane.f32.xlu0 %v1741
        %v1743 = vpop.xlane.xlu0 %1742
        %v1744 = vsel %vm1329, %v1607, 0.0
        %1745 = vadd.xlane.f32.xlu0 %v1744
        %v1746 = vpop.xlane.xlu0 %1745
        %v1747 = vsel %vm1329, %v1609, 0.0
        %1748 = vadd.xlane.f32.xlu0 %v1747
        %v1749 = vpop.xlane.xlu0 %1748
        %v1750 = vsel %vm1329, %v1611, 0.0
        %1751 = vadd.xlane.f32.xlu0 %v1750
        %v1752 = vpop.xlane.xlu0 %1751
        %v1753 = vsel %vm1329, %v1613, 0.0
        %1754 = vadd.xlane.f32.xlu0 %v1753
        %v1755 = vpop.xlane.xlu0 %1754
        %v1756 = vsel %vm1329, %v1615, 0.0
        %1757 = vadd.xlane.f32.xlu0 %v1756
        %v1758 = vpop.xlane.xlu0 %1757
        %v1759 = vsel %vm1329, %v1617, 0.0
        %1760 = vadd.xlane.f32.xlu0 %v1759
        %v1761 = vpop.xlane.xlu0 %1760
        %v1762 = vsel %vm1329, %v1619, 0.0
        %1763 = vadd.xlane.f32.xlu0 %v1762
        %v1764 = vpop.xlane.xlu0 %1763
        %v1765 = vsel %vm1329, %v1621, 0.0
        %1766 = vadd.xlane.f32.xlu0 %v1765
        %v1767 = vpop.xlane.xlu0 %1766
        %v1768 = vsel %vm1329, %v1623, 0.0
        %1769 = vadd.xlane.f32.xlu0 %v1768
        %v1770 = vpop.xlane.xlu0 %1769
        %v1771 = vsel %vm1329, %v1625, 0.0
        %1772 = vadd.xlane.f32.xlu0 %v1771
        %v1773 = vpop.xlane.xlu0 %1772
        %v1774 = vsel %vm1329, %v1627, 0.0
        %1775 = vadd.xlane.f32.xlu0 %v1774
        %v1776 = vpop.xlane.xlu0 %1775
        %v1777 = vsel %vm1329, %v1629, 0.0
        %1778 = vadd.xlane.f32.xlu0 %v1777
        %v1779 = vpop.xlane.xlu0 %1778
        %v1780 = vsel %vm1329, %v1631, 0.0
        %1781 = vadd.xlane.f32.xlu0 %v1780
        %v1782 = vpop.xlane.xlu0 %1781
        %v1783 = vsel %vm1329, %v1633, 0.0
        %1784 = vadd.xlane.f32.xlu0 %v1783
        %v1785 = vpop.xlane.xlu0 %1784
        %v1786 = vsel %vm1329, %v1635, 0.0
        %1787 = vadd.xlane.f32.xlu0 %v1786
        %v1788 = vpop.xlane.xlu0 %1787
        %v1789 = vsel %vm1329, %v1637, 0.0
        %1790 = vadd.xlane.f32.xlu0 %v1789
        %v1791 = vpop.xlane.xlu0 %1790
        %v1792 = vsel %vm1329, %v1639, 0.0
        %1793 = vadd.xlane.f32.xlu0 %v1792
        %v1794 = vpop.xlane.xlu0 %1793
        %v1795 = vsel %vm1329, %v1641, 0.0
        %1796 = vadd.xlane.f32.xlu0 %v1795
        %v1797 = vpop.xlane.xlu0 %1796
        %v1798 = vsel %vm1329, %v1643, 0.0
        %1799 = vadd.xlane.f32.xlu0 %v1798
        %v1800 = vpop.xlane.xlu0 %1799
        %v1801 = vsel %vm1329, %v1645, 0.0
        %1802 = vadd.xlane.f32.xlu0 %v1801
        %v1803 = vpop.xlane.xlu0 %1802
        %v1804 = vsel %vm1329, %v1647, 0.0
        %1805 = vadd.xlane.f32.xlu0 %v1804
        %v1806 = vpop.xlane.xlu0 %1805
        %v1807 = vsel %vm1329, %v1649, 0.0
        %1808 = vadd.xlane.f32.xlu0 %v1807
        %v1809 = vpop.xlane.xlu0 %1808
        %v1810 = vsel %vm1329, %v1651, 0.0
        %1811 = vadd.xlane.f32.xlu0 %v1810
        %v1812 = vpop.xlane.xlu0 %1811
        %v1813 = vsel %vm1329, %v1653, 0.0
        %1814 = vadd.xlane.f32.xlu0 %v1813
        %v1815 = vpop.xlane.xlu0 %1814
        %v1816 = vsel %vm1329, %v1655, 0.0
        %1817 = vadd.xlane.f32.xlu0 %v1816
        %v1818 = vpop.xlane.xlu0 %1817
        %v1819 = vsel %vm1329, %v1657, 0.0
        %1820 = vadd.xlane.f32.xlu0 %v1819
        %v1821 = vpop.xlane.xlu0 %1820
        %v1822 = vsel %vm1329, %v1659, 0.0
        %1823 = vadd.xlane.f32.xlu0 %v1822
        %v1824 = vpop.xlane.xlu0 %1823
        %v1825 = vsel %vm1329, %v1661, 0.0
        %1826 = vadd.xlane.f32.xlu0 %v1825
        %v1827 = vpop.xlane.xlu0 %1826
        %v1828 = vsel %vm1329, %v1663, 0.0
        %1829 = vadd.xlane.f32.xlu0 %v1828
        %v1830 = vpop.xlane.xlu0 %1829
        %v1831 = vsel %vm1329, %v1665, 0.0
        %1832 = vadd.xlane.f32.xlu0 %v1831
        %v1833 = vpop.xlane.xlu0 %1832
        %v1834 = vsel %vm1329, %v1667, 0.0
        %1835 = vadd.xlane.f32.xlu0 %v1834
        %v1836 = vpop.xlane.xlu0 %1835
        %v1837 = vsel %vm1329, %v1669, 0.0
        %1838 = vadd.xlane.f32.xlu0 %v1837
        %v1839 = vpop.xlane.xlu0 %1838
        %v1840 = vsel %vm1329, %v1671, 0.0
        %1841 = vadd.xlane.f32.xlu0 %v1840
        %v1842 = vpop.xlane.xlu0 %1841
        %v1843 = vsel %vm1329, %v1673, 0.0
        %1844 = vadd.xlane.f32.xlu0 %v1843
        %v1845 = vpop.xlane.xlu0 %1844
        %v1846 = vsel %vm1329, %v1675, 0.0
        %1847 = vadd.xlane.f32.xlu0 %v1846
        %v1848 = vpop.xlane.xlu0 %1847
        %v1849 = vsel %vm1329, %v1677, 0.0
        %1850 = vadd.xlane.f32.xlu0 %v1849
        %v1851 = vpop.xlane.xlu0 %1850
        %v1852 = vsel %vm1329, %v1679, 0.0
        %1853 = vadd.xlane.f32.xlu0 %v1852
        %v1854 = vpop.xlane.xlu0 %1853
        %v1855 = vsel %vm1329, %v1681, 0.0
        %1856 = vadd.xlane.f32.xlu0 %v1855
        %v1857 = vpop.xlane.xlu0 %1856
        %v1858 = vsel %vm1329, %v1683, 0.0
        %1859 = vadd.xlane.f32.xlu0 %v1858
        %v1860 = vpop.xlane.xlu0 %1859
        %v1861 = vsel %vm1329, %v1685, 0.0
        %1862 = vadd.xlane.f32.xlu0 %v1861
        %v1863 = vpop.xlane.xlu0 %1862
        %v1864 = vsel %vm1329, %v1687, 0.0
        %1865 = vadd.xlane.f32.xlu0 %v1864
        %v1866 = vpop.xlane.xlu0 %1865
        %v1867 = vsel %vm1329, %v1689, 0.0
        %1868 = vadd.xlane.f32.xlu0 %v1867
        %v1869 = vpop.xlane.xlu0 %1868
        %v1870 = vsel %vm1329, %v1691, 0.0
        %1871 = vadd.xlane.f32.xlu0 %v1870
        %v1872 = vpop.xlane.xlu0 %1871
        %v1873 = vsel %vm1329, %v1693, 0.0
        %1874 = vadd.xlane.f32.xlu0 %v1873
        %v1875 = vpop.xlane.xlu0 %1874
        %v1876 = vsel %vm1329, %v1695, 0.0
        %1877 = vadd.xlane.f32.xlu0 %v1876
        %v1878 = vpop.xlane.xlu0 %1877
        %v1879 = vsel %vm1329, %v1697, 0.0
        %1880 = vadd.xlane.f32.xlu0 %v1879
        %v1881 = vpop.xlane.xlu0 %1880
        %v1882 = vsel %vm1329, %v1699, 0.0
        %1883 = vadd.xlane.f32.xlu0 %v1882
        %v1884 = vpop.xlane.xlu0 %1883
        %v1885 = vsel %vm1329, %v1701, 0.0
        %1886 = vadd.xlane.f32.xlu0 %v1885
        %v1887 = vpop.xlane.xlu0 %1886
        %v1888 = vsel %vm1329, %v1703, 0.0
        %1889 = vadd.xlane.f32.xlu0 %v1888
        %v1890 = vpop.xlane.xlu0 %1889
        %v1891 = vsel %vm1329, %v1705, 0.0
        %1892 = vadd.xlane.f32.xlu0 %v1891
        %v1893 = vpop.xlane.xlu0 %1892
        %v1894 = vsel %vm1329, %v1707, 0.0
        %1895 = vadd.xlane.f32.xlu0 %v1894
        %v1896 = vpop.xlane.xlu0 %1895
        %v1897 = vsel %vm1329, %v1709, 0.0
        %1898 = vadd.xlane.f32.xlu0 %v1897
        %v1899 = vpop.xlane.xlu0 %1898
        %v1900 = vsel %vm1329, %v1711, 0.0
        %1901 = vadd.xlane.f32.xlu0 %v1900
        %v1902 = vpop.xlane.xlu0 %1901
        %v1903 = vsel %vm1329, %v1713, 0.0
        %1904 = vadd.xlane.f32.xlu0 %v1903
        %v1905 = vpop.xlane.xlu0 %1904
        %v1906 = vrcp.pop %v1716
        %v1907 = vrcp.pop %v1719
        %v1908 = vrcp.pop %v1722
        %v1909 = vrcp.pop %v1725
        %v1910 = vrcp.pop %v1728
        %v1911 = vrcp.pop %v1731
        %v1912 = vrcp.pop %v1734
        %v1913 = vrcp.pop %v1737
        %v1914 = vrcp.pop %v1740
        %v1915 = vrcp.pop %v1743
        %v1916 = vrcp.pop %v1746
        %v1917 = vrcp.pop %v1749
        %v1918 = vrcp.pop %v1752
        %v1919 = vrcp.pop %v1755
        %v1920 = vrcp.pop %v1758
        %v1921 = vrcp.pop %v1761
        %v1922 = vrcp.pop %v1764
        %v1923 = vrcp.pop %v1767
        %v1924 = vrcp.pop %v1770
        %v1925 = vrcp.pop %v1773
        %v1926 = vrcp.pop %v1776
        %v1927 = vrcp.pop %v1779
        %v1928 = vrcp.pop %v1782
        %v1929 = vrcp.pop %v1785
        %v1930 = vrcp.pop %v1788
        %v1931 = vrcp.pop %v1791
        %v1932 = vrcp.pop %v1794
        %v1933 = vrcp.pop %v1797
        %v1934 = vrcp.pop %v1800
        %v1935 = vrcp.pop %v1803
        %v1936 = vrcp.pop %v1806
        %v1937 = vrcp.pop %v1809
        %v1938 = vrcp.pop %v1812
        %v1939 = vrcp.pop %v1815
        %v1940 = vrcp.pop %v1818
        %v1941 = vrcp.pop %v1821
        %v1942 = vrcp.pop %v1824
        %v1943 = vrcp.pop %v1827
        %v1944 = vrcp.pop %v1830
        %v1945 = vrcp.pop %v1833
        %v1946 = vrcp.pop %v1836
        %v1947 = vrcp.pop %v1839
        %v1948 = vrcp.pop %v1842
        %v1949 = vrcp.pop %v1845
        %v1950 = vrcp.pop %v1848
        %v1951 = vrcp.pop %v1851
        %v1952 = vrcp.pop %v1854
        %v1953 = vrcp.pop %v1857
        %v1954 = vrcp.pop %v1860
        %v1955 = vrcp.pop %v1863
        %v1956 = vrcp.pop %v1866
        %v1957 = vrcp.pop %v1869
        %v1958 = vrcp.pop %v1872
        %v1959 = vrcp.pop %v1875
        %v1960 = vrcp.pop %v1878
        %v1961 = vrcp.pop %v1881
        %v1962 = vrcp.pop %v1884
        %v1963 = vrcp.pop %v1887
        %v1964 = vrcp.pop %v1890
        %v1965 = vrcp.pop %v1893
        %v1966 = vrcp.pop %v1896
        %v1967 = vrcp.pop %v1899
        %v1968 = vrcp.pop %v1902
        %v1969 = vrcp.pop %v1905
        %v1970 = vmul.f32 %v1587, %v1906
        %v1971 = vmul.f32 %v1589, %v1907
        %v1972 = vmul.f32 %v1591, %v1908
        %v1973 = vmul.f32 %v1593, %v1909
        %v1974 = vmul.f32 %v1595, %v1910
        %v1975 = vmul.f32 %v1597, %v1911
        %v1976 = vmul.f32 %v1599, %v1912
        %v1977 = vmul.f32 %v1601, %v1913
        %v1978 = vmul.f32 %v1603, %v1914
        %v1979 = vmul.f32 %v1605, %v1915
        %v1980 = vmul.f32 %v1607, %v1916
        %v1981 = vmul.f32 %v1609, %v1917
        %v1982 = vmul.f32 %v1611, %v1918
        %v1983 = vmul.f32 %v1613, %v1919
        %v1984 = vmul.f32 %v1615, %v1920
        %v1985 = vmul.f32 %v1617, %v1921
        %v1986 = vmul.f32 %v1619, %v1922
        %v1987 = vmul.f32 %v1621, %v1923
        %v1988 = vmul.f32 %v1623, %v1924
        %v1989 = vmul.f32 %v1625, %v1925
        %v1990 = vmul.f32 %v1627, %v1926
        %v1991 = vmul.f32 %v1629, %v1927
        %v1992 = vmul.f32 %v1631, %v1928
        %v1993 = vmul.f32 %v1633, %v1929
        %v1994 = vmul.f32 %v1635, %v1930
        %v1995 = vmul.f32 %v1637, %v1931
        %v1996 = vmul.f32 %v1639, %v1932
        %v1997 = vmul.f32 %v1641, %v1933
        %v1998 = vmul.f32 %v1643, %v1934
        %v1999 = vmul.f32 %v1645, %v1935
        %v2000 = vmul.f32 %v1647, %v1936
        %v2001 = vmul.f32 %v1649, %v1937
        %v2002 = vmul.f32 %v1651, %v1938
        %v2003 = vmul.f32 %v1653, %v1939
        %v2004 = vmul.f32 %v1655, %v1940
        %v2005 = vmul.f32 %v1657, %v1941
        %v2006 = vmul.f32 %v1659, %v1942
        %v2007 = vmul.f32 %v1661, %v1943
        %v2008 = vmul.f32 %v1663, %v1944
        %v2009 = vmul.f32 %v1665, %v1945
        %v2010 = vmul.f32 %v1667, %v1946
        %v2011 = vmul.f32 %v1669, %v1947
        %v2012 = vmul.f32 %v1671, %v1948
        %v2013 = vmul.f32 %v1673, %v1949
        %v2014 = vmul.f32 %v1675, %v1950
        %v2015 = vmul.f32 %v1677, %v1951
        %v2016 = vmul.f32 %v1679, %v1952
        %v2017 = vmul.f32 %v1681, %v1953
        %v2018 = vmul.f32 %v1683, %v1954
        %v2019 = vmul.f32 %v1685, %v1955
        %v2020 = vmul.f32 %v1687, %v1956
        %v2021 = vmul.f32 %v1689, %v1957
        %v2022 = vmul.f32 %v1691, %v1958
        %v2023 = vmul.f32 %v1693, %v1959
        %v2024 = vmul.f32 %v1695, %v1960
        %v2025 = vmul.f32 %v1697, %v1961
        %v2026 = vmul.f32 %v1699, %v1962
        %v2027 = vmul.f32 %v1701, %v1963
        %v2028 = vmul.f32 %v1703, %v1964
        %v2029 = vmul.f32 %v1705, %v1965
        %v2030 = vmul.f32 %v1707, %v1966
        %v2031 = vmul.f32 %v1709, %v1967
        %v2032 = vmul.f32 %v1711, %v1968
        %v2033 = vmul.f32 %v1713, %v1969
        %v2034 = vpack.c.bf16 %v1970, %v1970
        %v2035 = vpack.c.bf16 %v1971, %v1971
        %v2036 = vpack.c.bf16 %v1972, %v1972
        %v2037 = vpack.c.bf16 %v1973, %v1973
        %v2038 = vpack.c.bf16 %v1974, %v1974
        %v2039 = vpack.c.bf16 %v1975, %v1975
        %v2040 = vpack.c.bf16 %v1976, %v1976
        %v2041 = vpack.c.bf16 %v1977, %v1977
        %v2042 = vpack.c.bf16 %v1978, %v1978
        %v2043 = vpack.c.bf16 %v1979, %v1979
        %v2044 = vpack.c.bf16 %v1980, %v1980
        %v2045 = vpack.c.bf16 %v1981, %v1981
        %v2046 = vpack.c.bf16 %v1982, %v1982
        %v2047 = vpack.c.bf16 %v1983, %v1983
        %v2048 = vpack.c.bf16 %v1984, %v1984
        %v2049 = vpack.c.bf16 %v1985, %v1985
        %v2050 = vpack.c.bf16 %v1986, %v1986
        %v2051 = vpack.c.bf16 %v1987, %v1987
        %v2052 = vpack.c.bf16 %v1988, %v1988
        %v2053 = vpack.c.bf16 %v1989, %v1989
        %v2054 = vpack.c.bf16 %v1990, %v1990
        %v2055 = vpack.c.bf16 %v1991, %v1991
        %v2056 = vpack.c.bf16 %v1992, %v1992
        %v2057 = vpack.c.bf16 %v1993, %v1993
        %v2058 = vpack.c.bf16 %v1994, %v1994
        %v2059 = vpack.c.bf16 %v1995, %v1995
        %v2060 = vpack.c.bf16 %v1996, %v1996
        %v2061 = vpack.c.bf16 %v1997, %v1997
        %v2062 = vpack.c.bf16 %v1998, %v1998
        %v2063 = vpack.c.bf16 %v1999, %v1999
        %v2064 = vpack.c.bf16 %v2000, %v2000
        %v2065 = vpack.c.bf16 %v2001, %v2001
        %v2066 = vpack.c.bf16 %v2002, %v2002
        %v2067 = vpack.c.bf16 %v2003, %v2003
        %v2068 = vpack.c.bf16 %v2004, %v2004
        %v2069 = vpack.c.bf16 %v2005, %v2005
        %v2070 = vpack.c.bf16 %v2006, %v2006
        %v2071 = vpack.c.bf16 %v2007, %v2007
        %v2072 = vpack.c.bf16 %v2008, %v2008
        %v2073 = vpack.c.bf16 %v2009, %v2009
        %v2074 = vpack.c.bf16 %v2010, %v2010
        %v2075 = vpack.c.bf16 %v2011, %v2011
        %v2076 = vpack.c.bf16 %v2012, %v2012
        %v2077 = vpack.c.bf16 %v2013, %v2013
        %v2078 = vpack.c.bf16 %v2014, %v2014
        %v2079 = vpack.c.bf16 %v2015, %v2015
        %v2080 = vpack.c.bf16 %v2016, %v2016
        %v2081 = vpack.c.bf16 %v2017, %v2017
        %v2082 = vpack.c.bf16 %v2018, %v2018
        %v2083 = vpack.c.bf16 %v2019, %v2019
        %v2084 = vpack.c.bf16 %v2020, %v2020
        %v2085 = vpack.c.bf16 %v2021, %v2021
        %v2086 = vpack.c.bf16 %v2022, %v2022
        %v2087 = vpack.c.bf16 %v2023, %v2023
        %v2088 = vpack.c.bf16 %v2024, %v2024
        %v2089 = vpack.c.bf16 %v2025, %v2025
        %v2090 = vpack.c.bf16 %v2026, %v2026
        %v2091 = vpack.c.bf16 %v2027, %v2027
        %v2092 = vpack.c.bf16 %v2028, %v2028
        %v2093 = vpack.c.bf16 %v2029, %v2029
        %v2094 = vpack.c.bf16 %v2030, %v2030
        %v2095 = vpack.c.bf16 %v2031, %v2031
        %v2096 = vpack.c.bf16 %v2032, %v2032
        %v2097 = vpack.c.bf16 %v2033, %v2033
        %v2114 = vunpack.c.l.b16 %v2034
        %v2115 = vunpack.c.l.b16 %v2035
        %v2116 = vunpack.c.l.b16 %v2036
        %v2117 = vunpack.c.l.b16 %v2037
        %v2118 = vunpack.c.l.b16 %v2038
        %v2119 = vunpack.c.l.b16 %v2039
        %v2120 = vunpack.c.l.b16 %v2040
        %v2121 = vunpack.c.l.b16 %v2041
        %v2122 = vunpack.c.l.b16 %v2042
        %v2123 = vunpack.c.l.b16 %v2043
        %v2124 = vunpack.c.l.b16 %v2044
        %v2125 = vunpack.c.l.b16 %v2045
        %v2126 = vunpack.c.l.b16 %v2046
        %v2127 = vunpack.c.l.b16 %v2047
        %v2128 = vunpack.c.l.b16 %v2048
        %v2129 = vunpack.c.l.b16 %v2049
        %v2130 = vpack.c.b16 %v2115, %v2114
        %v2131 = vpack.c.b16 %v2117, %v2116
        %v2132 = vpack.c.b16 %v2119, %v2118
        %v2133 = vpack.c.b16 %v2121, %v2120
        %v2134 = vpack.c.b16 %v2123, %v2122
        %v2135 = vpack.c.b16 %v2125, %v2124
        %v2136 = vpack.c.b16 %v2127, %v2126
        %v2137 = vpack.c.b16 %v2129, %v2128
        %2138 = vrot.lane.b32.xlu0 %v825, 96
        %v2139 = vpop.permute.xlu0 %2138
        %v2142 = vsel %vm1329, %v2130, 0
        %v2145 = vsel %vm1329, %v2131, 0
        %v2148 = vsel %vm1329, %v2132, 0
        %v2151 = vsel %vm1329, %v2133, 0
        %v2154 = vsel %vm1329, %v2134, 0
        %v2157 = vsel %vm1329, %v2135, 0
        %v2160 = vsel %vm1329, %v2136, 0
        %v2163 = vsel %vm1329, %v2137, 0
        %2165 = vmatpush.bf16.msra.mxu0 0
        %2166 = vmatpush.bf16.msra.mxu0 0
        %2167 = vmatpush.bf16.msra.mxu0 0
        %2168 = vmatpush.bf16.msra.mxu0 0
        %2169 = vmatpush.bf16.msra.mxu0 0
        %2170 = vmatpush.bf16.msra.mxu0 0
        %2171 = vmatpush.bf16.msra.mxu0 0
        %2172 = vmatpush.bf16.msra.mxu0 %v2139
        %2173 = vmatmul.bf16.gmra.mxu0 %v2142
        %v2174 = vpop.f32.mrf.mxu0
        %v2175 = vadd.f32 0.0, %v2174
        %v2176 = vpop.f32.mrf.mxu0
        %v2177 = vadd.f32 0.0, %v2176
        %2178 = vmatmul.bf16.gmra.mxu0 %v2145
        %v2179 = vpop.f32.mrf.mxu0
        %v2180 = vadd.f32 0.0, %v2179
        %v2181 = vpop.f32.mrf.mxu0
        %v2182 = vadd.f32 0.0, %v2181
        %2183 = vmatmul.bf16.gmra.mxu0 %v2148
        %v2184 = vpop.f32.mrf.mxu0
        %v2185 = vadd.f32 0.0, %v2184
        %v2186 = vpop.f32.mrf.mxu0
        %v2187 = vadd.f32 0.0, %v2186
        %2188 = vmatmul.bf16.gmra.mxu0 %v2151
        %v2189 = vpop.f32.mrf.mxu0
        %v2190 = vadd.f32 0.0, %v2189
        %v2191 = vpop.f32.mrf.mxu0
        %v2192 = vadd.f32 0.0, %v2191
        %2193 = vmatmul.bf16.gmra.mxu0 %v2154
        %v2194 = vpop.f32.mrf.mxu0
        %v2195 = vadd.f32 0.0, %v2194
        %v2196 = vpop.f32.mrf.mxu0
        %v2197 = vadd.f32 0.0, %v2196
        %2198 = vmatmul.bf16.gmra.mxu0 %v2157
        %v2199 = vpop.f32.mrf.mxu0
        %v2200 = vadd.f32 0.0, %v2199
        %v2201 = vpop.f32.mrf.mxu0
        %v2202 = vadd.f32 0.0, %v2201
        %2203 = vmatmul.bf16.gmra.mxu0 %v2160
        %v2204 = vpop.f32.mrf.mxu0
        %v2205 = vadd.f32 0.0, %v2204
        %v2206 = vpop.f32.mrf.mxu0
        %v2207 = vadd.f32 0.0, %v2206
        %2208 = vmatmul.bf16.gmra.mxu0 %v2163
        %v2209 = vpop.f32.mrf.mxu0
        %v2210 = vadd.f32 0.0, %v2209
        %v2211 = vpop.f32.mrf.mxu0
        %v2212 = vadd.f32 0.0, %v2211
        %2213 = vdwg.mxu0
        %v2230 = vunpack.c.l.b16 %v2050
        %v2231 = vunpack.c.l.b16 %v2051
        %v2232 = vunpack.c.l.b16 %v2052
        %v2233 = vunpack.c.l.b16 %v2053
        %v2234 = vunpack.c.l.b16 %v2054
        %v2235 = vunpack.c.l.b16 %v2055
        %v2236 = vunpack.c.l.b16 %v2056
        %v2237 = vunpack.c.l.b16 %v2057
        %v2238 = vunpack.c.l.b16 %v2058
        %v2239 = vunpack.c.l.b16 %v2059
        %v2240 = vunpack.c.l.b16 %v2060
        %v2241 = vunpack.c.l.b16 %v2061
        %v2242 = vunpack.c.l.b16 %v2062
        %v2243 = vunpack.c.l.b16 %v2063
        %v2244 = vunpack.c.l.b16 %v2064
        %v2245 = vunpack.c.l.b16 %v2065
        %v2246 = vpack.c.b16 %v2231, %v2230
        %v2247 = vpack.c.b16 %v2233, %v2232
        %v2248 = vpack.c.b16 %v2235, %v2234
        %v2249 = vpack.c.b16 %v2237, %v2236
        %v2250 = vpack.c.b16 %v2239, %v2238
        %v2251 = vpack.c.b16 %v2241, %v2240
        %v2252 = vpack.c.b16 %v2243, %v2242
        %v2253 = vpack.c.b16 %v2245, %v2244
        %2254 = vrot.lane.b32.xlu0 %v946, 96
        %v2255 = vpop.permute.xlu0 %2254
        %v2258 = vsel %vm1329, %v2246, 0
        %v2261 = vsel %vm1329, %v2247, 0
        %v2264 = vsel %vm1329, %v2248, 0
        %v2267 = vsel %vm1329, %v2249, 0
        %v2270 = vsel %vm1329, %v2250, 0
        %v2273 = vsel %vm1329, %v2251, 0
        %v2276 = vsel %vm1329, %v2252, 0
        %v2279 = vsel %vm1329, %v2253, 0
        %2281 = vmatpush.bf16.msra.mxu0 0
        %2282 = vmatpush.bf16.msra.mxu0 0
        %2283 = vmatpush.bf16.msra.mxu0 0
        %2284 = vmatpush.bf16.msra.mxu0 0
        %2285 = vmatpush.bf16.msra.mxu0 0
        %2286 = vmatpush.bf16.msra.mxu0 0
        %2287 = vmatpush.bf16.msra.mxu0 0
        %2288 = vmatpush.bf16.msra.mxu0 %v2255
        %2289 = vmatmul.bf16.gmra.mxu0 %v2258
        %v2290 = vpop.f32.mrf.mxu0
        %v2291 = vadd.f32 0.0, %v2290
        %v2292 = vpop.f32.mrf.mxu0
        %v2293 = vadd.f32 0.0, %v2292
        %2294 = vmatmul.bf16.gmra.mxu0 %v2261
        %v2295 = vpop.f32.mrf.mxu0
        %v2296 = vadd.f32 0.0, %v2295
        %v2297 = vpop.f32.mrf.mxu0
        %v2298 = vadd.f32 0.0, %v2297
        %2299 = vmatmul.bf16.gmra.mxu0 %v2264
        %v2300 = vpop.f32.mrf.mxu0
        %v2301 = vadd.f32 0.0, %v2300
        %v2302 = vpop.f32.mrf.mxu0
        %v2303 = vadd.f32 0.0, %v2302
        %2304 = vmatmul.bf16.gmra.mxu0 %v2267
        %v2305 = vpop.f32.mrf.mxu0
        %v2306 = vadd.f32 0.0, %v2305
        %v2307 = vpop.f32.mrf.mxu0
        %v2308 = vadd.f32 0.0, %v2307
        %2309 = vmatmul.bf16.gmra.mxu0 %v2270
        %v2310 = vpop.f32.mrf.mxu0
        %v2311 = vadd.f32 0.0, %v2310
        %v2312 = vpop.f32.mrf.mxu0
        %v2313 = vadd.f32 0.0, %v2312
        %2314 = vmatmul.bf16.gmra.mxu0 %v2273
        %v2315 = vpop.f32.mrf.mxu0
        %v2316 = vadd.f32 0.0, %v2315
        %v2317 = vpop.f32.mrf.mxu0
        %v2318 = vadd.f32 0.0, %v2317
        %2319 = vmatmul.bf16.gmra.mxu0 %v2276
        %v2320 = vpop.f32.mrf.mxu0
        %v2321 = vadd.f32 0.0, %v2320
        %v2322 = vpop.f32.mrf.mxu0
        %v2323 = vadd.f32 0.0, %v2322
        %2324 = vmatmul.bf16.gmra.mxu0 %v2279
        %v2325 = vpop.f32.mrf.mxu0
        %v2326 = vadd.f32 0.0, %v2325
        %v2327 = vpop.f32.mrf.mxu0
        %v2328 = vadd.f32 0.0, %v2327
        %2329 = vdwg.mxu0
        %v2346 = vunpack.c.l.b16 %v2066
        %v2347 = vunpack.c.l.b16 %v2067
        %v2348 = vunpack.c.l.b16 %v2068
        %v2349 = vunpack.c.l.b16 %v2069
        %v2350 = vunpack.c.l.b16 %v2070
        %v2351 = vunpack.c.l.b16 %v2071
        %v2352 = vunpack.c.l.b16 %v2072
        %v2353 = vunpack.c.l.b16 %v2073
        %v2354 = vunpack.c.l.b16 %v2074
        %v2355 = vunpack.c.l.b16 %v2075
        %v2356 = vunpack.c.l.b16 %v2076
        %v2357 = vunpack.c.l.b16 %v2077
        %v2358 = vunpack.c.l.b16 %v2078
        %v2359 = vunpack.c.l.b16 %v2079
        %v2360 = vunpack.c.l.b16 %v2080
        %v2361 = vunpack.c.l.b16 %v2081
        %v2362 = vpack.c.b16 %v2347, %v2346
        %v2363 = vpack.c.b16 %v2349, %v2348
        %v2364 = vpack.c.b16 %v2351, %v2350
        %v2365 = vpack.c.b16 %v2353, %v2352
        %v2366 = vpack.c.b16 %v2355, %v2354
        %v2367 = vpack.c.b16 %v2357, %v2356
        %v2368 = vpack.c.b16 %v2359, %v2358
        %v2369 = vpack.c.b16 %v2361, %v2360
        %2370 = vrot.lane.b32.xlu0 %v1067, 96
        %v2371 = vpop.permute.xlu0 %2370
        %v2374 = vsel %vm1329, %v2362, 0
        %v2377 = vsel %vm1329, %v2363, 0
        %v2380 = vsel %vm1329, %v2364, 0
        %v2383 = vsel %vm1329, %v2365, 0
        %v2386 = vsel %vm1329, %v2366, 0
        %v2389 = vsel %vm1329, %v2367, 0
        %v2392 = vsel %vm1329, %v2368, 0
        %v2395 = vsel %vm1329, %v2369, 0
        %2397 = vmatpush.bf16.msra.mxu0 0
        %2398 = vmatpush.bf16.msra.mxu0 0
        %2399 = vmatpush.bf16.msra.mxu0 0
        %2400 = vmatpush.bf16.msra.mxu0 0
        %2401 = vmatpush.bf16.msra.mxu0 0
        %2402 = vmatpush.bf16.msra.mxu0 0
        %2403 = vmatpush.bf16.msra.mxu0 0
        %2404 = vmatpush.bf16.msra.mxu0 %v2371
        %2405 = vmatmul.bf16.gmra.mxu0 %v2374
        %v2406 = vpop.f32.mrf.mxu0
        %v2407 = vadd.f32 0.0, %v2406
        %v2408 = vpop.f32.mrf.mxu0
        %v2409 = vadd.f32 0.0, %v2408
        %2410 = vmatmul.bf16.gmra.mxu0 %v2377
        %v2411 = vpop.f32.mrf.mxu0
        %v2412 = vadd.f32 0.0, %v2411
        %v2413 = vpop.f32.mrf.mxu0
        %v2414 = vadd.f32 0.0, %v2413
        %2415 = vmatmul.bf16.gmra.mxu0 %v2380
        %v2416 = vpop.f32.mrf.mxu0
        %v2417 = vadd.f32 0.0, %v2416
        %v2418 = vpop.f32.mrf.mxu0
        %v2419 = vadd.f32 0.0, %v2418
        %2420 = vmatmul.bf16.gmra.mxu0 %v2383
        %v2421 = vpop.f32.mrf.mxu0
        %v2422 = vadd.f32 0.0, %v2421
        %v2423 = vpop.f32.mrf.mxu0
        %v2424 = vadd.f32 0.0, %v2423
        %2425 = vmatmul.bf16.gmra.mxu0 %v2386
        %v2426 = vpop.f32.mrf.mxu0
        %v2427 = vadd.f32 0.0, %v2426
        %v2428 = vpop.f32.mrf.mxu0
        %v2429 = vadd.f32 0.0, %v2428
        %2430 = vmatmul.bf16.gmra.mxu0 %v2389
        %v2431 = vpop.f32.mrf.mxu0
        %v2432 = vadd.f32 0.0, %v2431
        %v2433 = vpop.f32.mrf.mxu0
        %v2434 = vadd.f32 0.0, %v2433
        %2435 = vmatmul.bf16.gmra.mxu0 %v2392
        %v2436 = vpop.f32.mrf.mxu0
        %v2437 = vadd.f32 0.0, %v2436
        %v2438 = vpop.f32.mrf.mxu0
        %v2439 = vadd.f32 0.0, %v2438
        %2440 = vmatmul.bf16.gmra.mxu0 %v2395
        %v2441 = vpop.f32.mrf.mxu0
        %v2442 = vadd.f32 0.0, %v2441
        %v2443 = vpop.f32.mrf.mxu0
        %v2444 = vadd.f32 0.0, %v2443
        %2445 = vdwg.mxu0
        %v2462 = vunpack.c.l.b16 %v2082
        %v2463 = vunpack.c.l.b16 %v2083
        %v2464 = vunpack.c.l.b16 %v2084
        %v2465 = vunpack.c.l.b16 %v2085
        %v2466 = vunpack.c.l.b16 %v2086
        %v2467 = vunpack.c.l.b16 %v2087
        %v2468 = vunpack.c.l.b16 %v2088
        %v2469 = vunpack.c.l.b16 %v2089
        %v2470 = vunpack.c.l.b16 %v2090
        %v2471 = vunpack.c.l.b16 %v2091
        %v2472 = vunpack.c.l.b16 %v2092
        %v2473 = vunpack.c.l.b16 %v2093
        %v2474 = vunpack.c.l.b16 %v2094
        %v2475 = vunpack.c.l.b16 %v2095
        %v2476 = vunpack.c.l.b16 %v2096
        %v2477 = vunpack.c.l.b16 %v2097
        %v2478 = vpack.c.b16 %v2463, %v2462
        %v2479 = vpack.c.b16 %v2465, %v2464
        %v2480 = vpack.c.b16 %v2467, %v2466
        %v2481 = vpack.c.b16 %v2469, %v2468
        %v2482 = vpack.c.b16 %v2471, %v2470
        %v2483 = vpack.c.b16 %v2473, %v2472
        %v2484 = vpack.c.b16 %v2475, %v2474
        %v2485 = vpack.c.b16 %v2477, %v2476
        %2486 = vrot.lane.b32.xlu0 %v1188, 96
        %v2487 = vpop.permute.xlu0 %2486
        %v2490 = vsel %vm1329, %v2478, 0
        %v2493 = vsel %vm1329, %v2479, 0
        %v2496 = vsel %vm1329, %v2480, 0
        %v2499 = vsel %vm1329, %v2481, 0
        %v2502 = vsel %vm1329, %v2482, 0
        %v2505 = vsel %vm1329, %v2483, 0
        %v2508 = vsel %vm1329, %v2484, 0
        %v2511 = vsel %vm1329, %v2485, 0
        %2513 = vmatpush.bf16.msra.mxu0 0
        %2514 = vmatpush.bf16.msra.mxu0 0
        %2515 = vmatpush.bf16.msra.mxu0 0
        %2516 = vmatpush.bf16.msra.mxu0 0
        %2517 = vmatpush.bf16.msra.mxu0 0
        %2518 = vmatpush.bf16.msra.mxu0 0
        %2519 = vmatpush.bf16.msra.mxu0 0
        %2520 = vmatpush.bf16.msra.mxu0 %v2487
        %2521 = vmatmul.bf16.gmra.mxu0 %v2490
        %v2522 = vpop.f32.mrf.mxu0
        %v2523 = vadd.f32 0.0, %v2522
        %v2524 = vpop.f32.mrf.mxu0
        %v2525 = vadd.f32 0.0, %v2524
        %2526 = vmatmul.bf16.gmra.mxu0 %v2493
        %v2527 = vpop.f32.mrf.mxu0
        %v2528 = vadd.f32 0.0, %v2527
        %v2529 = vpop.f32.mrf.mxu0
        %v2530 = vadd.f32 0.0, %v2529
        %2531 = vmatmul.bf16.gmra.mxu0 %v2496
        %v2532 = vpop.f32.mrf.mxu0
        %v2533 = vadd.f32 0.0, %v2532
        %v2534 = vpop.f32.mrf.mxu0
        %v2535 = vadd.f32 0.0, %v2534
        %2536 = vmatmul.bf16.gmra.mxu0 %v2499
        %v2537 = vpop.f32.mrf.mxu0
        %v2538 = vadd.f32 0.0, %v2537
        %v2539 = vpop.f32.mrf.mxu0
        %v2540 = vadd.f32 0.0, %v2539
        %2541 = vmatmul.bf16.gmra.mxu0 %v2502
        %v2542 = vpop.f32.mrf.mxu0
        %v2543 = vadd.f32 0.0, %v2542
        %v2544 = vpop.f32.mrf.mxu0
        %v2545 = vadd.f32 0.0, %v2544
        %2546 = vmatmul.bf16.gmra.mxu0 %v2505
        %v2547 = vpop.f32.mrf.mxu0
        %v2548 = vadd.f32 0.0, %v2547
        %v2549 = vpop.f32.mrf.mxu0
        %v2550 = vadd.f32 0.0, %v2549
        %2551 = vmatmul.bf16.gmra.mxu0 %v2508
        %v2552 = vpop.f32.mrf.mxu0
        %v2553 = vadd.f32 0.0, %v2552
        %v2554 = vpop.f32.mrf.mxu0
        %v2555 = vadd.f32 0.0, %v2554
        %2556 = vmatmul.bf16.gmra.mxu0 %v2511
        %v2557 = vpop.f32.mrf.mxu0
        %v2558 = vadd.f32 0.0, %v2557
        %v2559 = vpop.f32.mrf.mxu0
        %v2560 = vadd.f32 0.0, %v2559
        %2561 = vdwg.mxu0
        %v2562 = vmul.f32 %v2175, %v637
        %v2563 = vmul.f32 %v2177, %v638
        %v2564 = vmul.f32 %v2180, %v639
        %v2565 = vmul.f32 %v2182, %v640
        %v2566 = vmul.f32 %v2185, %v641
        %v2567 = vmul.f32 %v2187, %v642
        %v2568 = vmul.f32 %v2190, %v643
        %v2569 = vmul.f32 %v2192, %v644
        %v2570 = vmul.f32 %v2195, %v645
        %v2571 = vmul.f32 %v2197, %v646
        %v2572 = vmul.f32 %v2200, %v647
        %v2573 = vmul.f32 %v2202, %v648
        %v2574 = vmul.f32 %v2205, %v649
        %v2575 = vmul.f32 %v2207, %v650
        %v2576 = vmul.f32 %v2210, %v651
        %v2577 = vmul.f32 %v2212, %v652
        %v2578 = vmul.f32 %v2291, %v637
        %v2579 = vmul.f32 %v2293, %v638
        %v2580 = vmul.f32 %v2296, %v639
        %v2581 = vmul.f32 %v2298, %v640
        %v2582 = vmul.f32 %v2301, %v641
        %v2583 = vmul.f32 %v2303, %v642
        %v2584 = vmul.f32 %v2306, %v643
        %v2585 = vmul.f32 %v2308, %v644
        %v2586 = vmul.f32 %v2311, %v645
        %v2587 = vmul.f32 %v2313, %v646
        %v2588 = vmul.f32 %v2316, %v647
        %v2589 = vmul.f32 %v2318, %v648
        %v2590 = vmul.f32 %v2321, %v649
        %v2591 = vmul.f32 %v2323, %v650
        %v2592 = vmul.f32 %v2326, %v651
        %v2593 = vmul.f32 %v2328, %v652
        %v2594 = vmul.f32 %v2407, %v637
        %v2595 = vmul.f32 %v2409, %v638
        %v2596 = vmul.f32 %v2412, %v639
        %v2597 = vmul.f32 %v2414, %v640
        %v2598 = vmul.f32 %v2417, %v641
        %v2599 = vmul.f32 %v2419, %v642
        %v2600 = vmul.f32 %v2422, %v643
        %v2601 = vmul.f32 %v2424, %v644
        %v2602 = vmul.f32 %v2427, %v645
        %v2603 = vmul.f32 %v2429, %v646
        %v2604 = vmul.f32 %v2432, %v647
        %v2605 = vmul.f32 %v2434, %v648
        %v2606 = vmul.f32 %v2437, %v649
        %v2607 = vmul.f32 %v2439, %v650
        %v2608 = vmul.f32 %v2442, %v651
        %v2609 = vmul.f32 %v2444, %v652
        %v2610 = vmul.f32 %v2523, %v637
        %v2611 = vmul.f32 %v2525, %v638
        %v2612 = vmul.f32 %v2528, %v639
        %v2613 = vmul.f32 %v2530, %v640
        %v2614 = vmul.f32 %v2533, %v641
        %v2615 = vmul.f32 %v2535, %v642
        %v2616 = vmul.f32 %v2538, %v643
        %v2617 = vmul.f32 %v2540, %v644
        %v2618 = vmul.f32 %v2543, %v645
        %v2619 = vmul.f32 %v2545, %v646
        %v2620 = vmul.f32 %v2548, %v647
        %v2621 = vmul.f32 %v2550, %v648
        %v2622 = vmul.f32 %v2553, %v649
        %v2623 = vmul.f32 %v2555, %v650
        %v2624 = vmul.f32 %v2558, %v651
        %v2625 = vmul.f32 %v2560, %v652
        %v2626 = vsel %vm452, %v2562, 0.0
        %v2627 = vsel %vm452, %v2564, 0.0
        %v2628 = vadd.f32 %v2626, %v2627
        %v2629 = vsel %vm452, %v2566, 0.0
        %v2630 = vadd.f32 %v2628, %v2629
        %v2631 = vsel %vm452, %v2568, 0.0
        %v2632 = vadd.f32 %v2630, %v2631
        %v2633 = vsel %vm452, %v2570, 0.0
        %v2634 = vadd.f32 %v2632, %v2633
        %v2635 = vsel %vm452, %v2572, 0.0
        %v2636 = vadd.f32 %v2634, %v2635
        %v2637 = vsel %vm452, %v2574, 0.0
        %v2638 = vadd.f32 %v2636, %v2637
        %v2639 = vsel %vm452, %v2576, 0.0
        %v2640 = vadd.f32 %v2638, %v2639
        %v2641 = vsel %vm452, %v2563, 0.0
        %v2642 = vsel %vm452, %v2565, 0.0
        %v2643 = vadd.f32 %v2641, %v2642
        %v2644 = vsel %vm452, %v2567, 0.0
        %v2645 = vadd.f32 %v2643, %v2644
        %v2646 = vsel %vm452, %v2569, 0.0
        %v2647 = vadd.f32 %v2645, %v2646
        %v2648 = vsel %vm452, %v2571, 0.0
        %v2649 = vadd.f32 %v2647, %v2648
        %v2650 = vsel %vm452, %v2573, 0.0
        %v2651 = vadd.f32 %v2649, %v2650
        %v2652 = vsel %vm452, %v2575, 0.0
        %v2653 = vadd.f32 %v2651, %v2652
        %v2654 = vsel %vm452, %v2577, 0.0
        %v2655 = vadd.f32 %v2653, %v2654
        %v2656 = vsel %vm452, %v2578, 0.0
        %v2657 = vsel %vm452, %v2580, 0.0
        %v2658 = vadd.f32 %v2656, %v2657
        %v2659 = vsel %vm452, %v2582, 0.0
        %v2660 = vadd.f32 %v2658, %v2659
        %v2661 = vsel %vm452, %v2584, 0.0
        %v2662 = vadd.f32 %v2660, %v2661
        %v2663 = vsel %vm452, %v2586, 0.0
        %v2664 = vadd.f32 %v2662, %v2663
        %v2665 = vsel %vm452, %v2588, 0.0
        %v2666 = vadd.f32 %v2664, %v2665
        %v2667 = vsel %vm452, %v2590, 0.0
        %v2668 = vadd.f32 %v2666, %v2667
        %v2669 = vsel %vm452, %v2592, 0.0
        %v2670 = vadd.f32 %v2668, %v2669
        %v2671 = vsel %vm452, %v2579, 0.0
        %v2672 = vsel %vm452, %v2581, 0.0
        %v2673 = vadd.f32 %v2671, %v2672
        %v2674 = vsel %vm452, %v2583, 0.0
        %v2675 = vadd.f32 %v2673, %v2674
        %v2676 = vsel %vm452, %v2585, 0.0
        %v2677 = vadd.f32 %v2675, %v2676
        %v2678 = vsel %vm452, %v2587, 0.0
        %v2679 = vadd.f32 %v2677, %v2678
        %v2680 = vsel %vm452, %v2589, 0.0
        %v2681 = vadd.f32 %v2679, %v2680
        %v2682 = vsel %vm452, %v2591, 0.0
        %v2683 = vadd.f32 %v2681, %v2682
        %v2684 = vsel %vm452, %v2593, 0.0
        %v2685 = vadd.f32 %v2683, %v2684
        %v2686 = vsel %vm452, %v2594, 0.0
        %v2687 = vsel %vm452, %v2596, 0.0
        %v2688 = vadd.f32 %v2686, %v2687
        %v2689 = vsel %vm452, %v2598, 0.0
        %v2690 = vadd.f32 %v2688, %v2689
        %v2691 = vsel %vm452, %v2600, 0.0
        %v2692 = vadd.f32 %v2690, %v2691
        %v2693 = vsel %vm452, %v2602, 0.0
        %v2694 = vadd.f32 %v2692, %v2693
        %v2695 = vsel %vm452, %v2604, 0.0
        %v2696 = vadd.f32 %v2694, %v2695
        %v2697 = vsel %vm452, %v2606, 0.0
        %v2698 = vadd.f32 %v2696, %v2697
        %v2699 = vsel %vm452, %v2608, 0.0
        %v2700 = vadd.f32 %v2698, %v2699
        %v2701 = vsel %vm452, %v2595, 0.0
        %v2702 = vsel %vm452, %v2597, 0.0
        %v2703 = vadd.f32 %v2701, %v2702
        %v2704 = vsel %vm452, %v2599, 0.0
        %v2705 = vadd.f32 %v2703, %v2704
        %v2706 = vsel %vm452, %v2601, 0.0
        %v2707 = vadd.f32 %v2705, %v2706
        %v2708 = vsel %vm452, %v2603, 0.0
        %v2709 = vadd.f32 %v2707, %v2708
        %v2710 = vsel %vm452, %v2605, 0.0
        %v2711 = vadd.f32 %v2709, %v2710
        %v2712 = vsel %vm452, %v2607, 0.0
        %v2713 = vadd.f32 %v2711, %v2712
        %v2714 = vsel %vm452, %v2609, 0.0
        %v2715 = vadd.f32 %v2713, %v2714
        %v2716 = vsel %vm452, %v2610, 0.0
        %v2717 = vsel %vm452, %v2612, 0.0
        %v2718 = vadd.f32 %v2716, %v2717
        %v2719 = vsel %vm452, %v2614, 0.0
        %v2720 = vadd.f32 %v2718, %v2719
        %v2721 = vsel %vm452, %v2616, 0.0
        %v2722 = vadd.f32 %v2720, %v2721
        %v2723 = vsel %vm452, %v2618, 0.0
        %v2724 = vadd.f32 %v2722, %v2723
        %v2725 = vsel %vm452, %v2620, 0.0
        %v2726 = vadd.f32 %v2724, %v2725
        %v2727 = vsel %vm452, %v2622, 0.0
        %v2728 = vadd.f32 %v2726, %v2727
        %v2729 = vsel %vm452, %v2624, 0.0
        %v2730 = vadd.f32 %v2728, %v2729
        %v2731 = vsel %vm452, %v2611, 0.0
        %v2732 = vsel %vm452, %v2613, 0.0
        %v2733 = vadd.f32 %v2731, %v2732
        %v2734 = vsel %vm452, %v2615, 0.0
        %v2735 = vadd.f32 %v2733, %v2734
        %v2736 = vsel %vm452, %v2617, 0.0
        %v2737 = vadd.f32 %v2735, %v2736
        %v2738 = vsel %vm452, %v2619, 0.0
        %v2739 = vadd.f32 %v2737, %v2738
        %v2740 = vsel %vm452, %v2621, 0.0
        %v2741 = vadd.f32 %v2739, %v2740
        %v2742 = vsel %vm452, %v2623, 0.0
        %v2743 = vadd.f32 %v2741, %v2742
        %v2744 = vsel %vm452, %v2625, 0.0
        %v2745 = vadd.f32 %v2743, %v2744
        %v2746 = vsub.f32 %v549, %v2640
        %v2747 = vsub.f32 %v551, %v2655
        %v2748 = vsub.f32 %v554, %v2670
        %v2749 = vsub.f32 %v556, %v2685
        %v2750 = vsub.f32 %v559, %v2700
        %v2751 = vsub.f32 %v561, %v2715
        %v2752 = vsub.f32 %v564, %v2730
        %v2753 = vsub.f32 %v566, %v2745
        %v2754 = vpack.c.bf16 %v2747, %v2746
        %v2755 = vpack.c.bf16 %v2749, %v2748
        %v2756 = vpack.c.bf16 %v2751, %v2750
        %v2757 = vpack.c.bf16 %v2753, %v2752
        %v2758 = vld [vmem:[%s4] sm:$0xf]
        %v2759 = vld [vmem:[%s4 + $0x4] sm:$0xf]
        %v2760 = vld [vmem:[%s4 + $0x8] sm:$0xf]
        %v2761 = vld [vmem:[%s4 + $0xc] sm:$0xf]
        %v2762 = vld [vmem:[%s5] sm:$0x1]
        %v2764 = vperm.slane %v2762, 0
        %v2770 = vunpack.c.l.b16 %v2758
        %v2771 = vunpack.c.l.b16 %v2759
        %v2772 = vunpack.c.l.b16 %v2760
        %v2773 = vunpack.c.l.b16 %v2761
        %v2774 = vpack.c.b16 %v2771, %v2770
        %v2775 = vpack.c.b16 %v2773, %v2772
        %v2779 = vsel %vm452, %v2754, 0
        %v2782 = vsel %vm452, %v2755, 0
        %v2785 = vsel %vm452, %v2756, 0
        %v2788 = vsel %vm452, %v2757, 0
        %2790 = vmatpush.bf16.msra.mxu0 0
        %2791 = vmatpush.bf16.msra.mxu0 0
        %2792 = vmatpush.bf16.msra.mxu0 0
        %2793 = vmatpush.bf16.msra.mxu0 0
        %2794 = vmatpush.bf16.msra.mxu0 0
        %2795 = vmatpush.bf16.msra.mxu0 0
        %2796 = vmatpush.bf16.msra.mxu0 %v2775
        %2797 = vmatpush.bf16.msra.mxu0 %v2774
        %2798 = vmatmul.bf16.gmra.mxu0 %v2779
        %v2799 = vpop.f32.mrf.mxu0
        %v2800 = vadd.f32 %v2764, %v2799
        %v2801 = vpop.f32.mrf.mxu0
        %v2802 = vadd.f32 %v2764, %v2801
        %2803 = vmatmul.bf16.gmra.mxu0 %v2782
        %v2804 = vpop.f32.mrf.mxu0
        %v2805 = vadd.f32 %v2764, %v2804
        %v2806 = vpop.f32.mrf.mxu0
        %v2807 = vadd.f32 %v2764, %v2806
        %2808 = vmatmul.bf16.gmra.mxu0 %v2785
        %v2809 = vpop.f32.mrf.mxu0
        %v2810 = vadd.f32 %v2764, %v2809
        %v2811 = vpop.f32.mrf.mxu0
        %v2812 = vadd.f32 %v2764, %v2811
        %2813 = vmatmul.bf16.gmra.mxu0 %v2788
        %v2814 = vpop.f32.mrf.mxu0
        %v2815 = vadd.f32 %v2764, %v2814
        %v2816 = vpop.f32.mrf.mxu0
        %v2817 = vadd.f32 %v2764, %v2816
        %2818 = vdwg.mxu0
        %2819 = vst.msk [vmem:[%s301] sm:$0xff] %vm452, %v2800
        %2820 = vst.msk [vmem:[%s301 + $0x8] sm:$0xff] %vm452, %v2802
        %2821 = vst.msk [vmem:[%s301 + $0x10] sm:$0xff] %vm452, %v2805
        %2822 = vst.msk [vmem:[%s301 + $0x18] sm:$0xff] %vm452, %v2807
        %2823 = vst.msk [vmem:[%s301 + $0x20] sm:$0xff] %vm452, %v2810
        %2824 = vst.msk [vmem:[%s301 + $0x28] sm:$0xff] %vm452, %v2812
        %2825 = vst.msk [vmem:[%s301 + $0x30] sm:$0xff] %vm452, %v2815
        %2826 = vst.msk [vmem:[%s301 + $0x38] sm:$0xff] %vm452, %v2817
        %s2827 = sand.u32 %s203, 1
        %s2828 = scalar_lea.sflag [#allocation3], %s2827
        %s2829 = sand.u32 %s203, 1
        %s2830 = smul.addr %s2829, 64
        %s2831 = scalar_lea.vmem [#allocation2], %s2830
        // Predicated region
        $region53: #{tpu_custom_call.1} parent=51 // pred_check
          %p2832 = pneg %p213
        $region54: #{tpu_custom_call.1} parent=51 // pred_check_branch
          %2834 = sbr.rel (%p2832) target = $region56
        $region55: #{tpu_custom_call.1} parent=51 // pred_region
          %s2835 = smul.u32 4, %s22
          %2837 = vsyncadd %s2828, 0
          %s2838 = smul.addr %s2835, 2
          %s2839 = smul.addr %s2838, 8
          %s2840 = scalar_lea.hbm %s8, %s2839
          %s2841 = sshll.u32 %s2831, 4
          %s2842 = int_to_ptr.vmem [resolvable:$true] %s2841
          %s2843 = sshll.u32 %s2840, 4
          %s2844 = int_to_ptr.hbm [resolvable:$true] %s2843
          %2849 = dma.vmem_to_hbm [thread:$0]  %s2842, 1024, %s2844, %s2828, 128, 128, 8
        $region56: #{tpu_custom_call.1} parent=51 // pred_fallthru
          _
      $region52: #{tpu_custom_call.1} parent=5 // pred_fallthru
        _
      %p2850 = scmp.le.s32.totalorder 2, %s17
      // Predicated region
      $region57: #{tpu_custom_call.1} parent=5 // pred_check
        %p2851 = pneg %p2850
      $region58: #{tpu_custom_call.1} parent=5 // pred_check_branch
        %2853 = sbr.rel (%p2851) target = $region60
      $region59: #{tpu_custom_call.1} parent=5 // pred_region
        %s2854 = ssub.s32 %s17, 2
        // Predicated region
        $region61: #{tpu_custom_call.1} parent=59 // pred_check
          %p2855 = pneg %p219
        $region62: #{tpu_custom_call.1} parent=59 // pred_check_branch
          %2857 = sbr.rel (%p2855) target = $region64
        $region63: #{tpu_custom_call.1} parent=59 // pred_region
          %s2858 = sand.u32 %s204, 1
          %s2859 = scalar_lea.sflag [#allocation3], %s2858
          %s2860 = sand.u32 %s204, 1
          %s2861 = smul.addr %s2860, 64
          %s2862 = scalar_lea.vmem [#allocation2], %s2861
          %2864 = dma.done %s2859, 1024
        $region64: #{tpu_custom_call.1} parent=59 // pred_fallthru
          _
      $region60: #{tpu_custom_call.1} parent=5 // pred_fallthru
        _
    $region6: #{tpu_custom_call.1} parent=1 // loop_footer
      %s21 = sadd.s32 1, %s17
    $region7: #{tpu_custom_call.1} parent=1 // loop_footer_branch
      %16 = sbr.rel target = $region3
    $region8: #{tpu_custom_call.1} parent=1 // loop_exit
      _
    %2865 = vsyncpa [#allocation3], 1
    %s2866 = scalar_lea.sflag [#allocation3], 1
    %2867 = vsyncpa %s2866, 1

</llo_original>
